<compile_context>
chip_gen: v5e
topology: v5e:2x2
jax: 0.10.0
libtpu: 0.0.40
codegen_flags: <defaults>
</compile_context>

<pallas_src>
import functools

import jax
import jax.numpy as jnp
from jax import lax
from jax.experimental import pallas as pl
from jax.experimental.pallas import tpu as pltpu


def _round_up(x, m):
    return ((x + m - 1) // m) * m


def _choose_tiles(n):
    """Pick padded node count + tile sizes.

    Guarantees: np_ % tile_m == 0, np_ % tile_k == 0, tiles are multiples of
    128, and the row-tile count is >= 2 (so v7x's two TensorCores both get
    work along the "parallel" axis).
    """
    np_ = _round_up(max(n, 256), 256)
    tile_k = 512 if np_ % 512 == 0 else 256
    if np_ % 512 == 0 and np_ // 512 >= 2:
        tile_m = 512
    else:
        tile_m = np_ // 2            # multiple of 128; even (=2) row-tile count
    return np_, tile_m, tile_k


# Keep P = X @ W fully VMEM-resident if its bf16 footprint is below this
# (conservative for v7x's 64 MiB VMEM, trivially fine on v5e/v6e's 128 MiB).
_P_RESIDENT_MAX_BYTES = 8 * 1024 * 1024
_VMEM_LIMIT_BYTES = 48 * 1024 * 1024


def _gcn_layer_kernel(a_ref, p_ref, b_ref, o_ref, *scratch, epilogue,
                      n_valid_cols, tile_k, p_resident):
    """One GCN layer tile-step:  acc += A[i,k] @ P[k]; finalize at k==last.

    a_ref : [TM, TK]        bf16  normalized adjacency tile (streamed)
    p_ref : [Np, Cout] or [TK, Cout]  bf16  precomputed P = X @ W
                                     (VMEM-resident or streamed per K tile)
    b_ref : [1, Cout]       f32   bias
    o_ref : [TM, Cout]            layer output tile (bf16 L1, f32 L2)
    scratch: ([TM, Cout] f32,)    accumulator for layer 1; layer 2 accumulates
                                  directly into the resident f32 output block.
    """
    acc_ref = scratch[0] if scratch else o_ref
    k = pl.program_id(1)

    @pl.when(k == 0)
    def _():
        # Fold the bias into the accumulator init (saves a VPU add in the
        # epilogue).
        acc_ref[...] = jnp.broadcast_to(b_ref[...], acc_ref.shape).astype(
            acc_ref.dtype)

    if p_resident:
        start = pl.multiple_of(k * tile_k, tile_k)
        pk = p_ref[pl.ds(start, tile_k), :]
    else:
        pk = p_ref[...]

    # Aggregation: stream the A tile through the MXU, accumulate in f32.
    acc_ref[...] += jnp.dot(a_ref[...], pk, preferred_element_type=jnp.float32)

    @pl.when(k == pl.num_programs(1) - 1)
    def _():
        z = acc_ref[...]
        if epilogue == "relu":
            # relu(); the second F.relu in the reference is idempotent.
            # TODO(synk): F.dropout(training=True) is stochastic; implemented
            # as identity (eval-mode semantics).
            o_ref[...] = jnp.maximum(z, 0.0).astype(o_ref.dtype)
        else:  # masked log_softmax over the first n_valid_cols (real) lanes
            lane = lax.broadcasted_iota(jnp.int32, z.shape, 1)
            valid = lane < n_valid_cols
            m = jnp.max(jnp.where(valid, z, -jnp.inf), axis=-1, keepdims=True)
            e = jnp.where(valid, jnp.exp(z - m), 0.0)
            lse = jnp.log(jnp.sum(e, axis=-1, keepdims=True))
            o_ref[...] = ((z - m) - lse).astype(o_ref.dtype)


def _gcn_layer(a_hat, p, b, *, epilogue, n_valid_cols, out_dtype,
               tile_m, tile_k):
    """Tiled pallas_call for one GCN layer:  f(A_hat @ P + b), P = X W."""
    np_ = a_hat.shape[0]
    c_out = p.shape[1]
    grid = (np_ // tile_m, np_ // tile_k)

    p_resident = (np_ * c_out * 2) <= _P_RESIDENT_MAX_BYTES
    if p_resident:
        # Constant block index => DMA'd into VMEM once, sliced in-kernel.
        p_spec = pl.BlockSpec((np_, c_out), lambda i, k: (0, 0))
    else:
        p_spec = pl.BlockSpec((tile_k, c_out), lambda i, k: (k, 0))

    # Layer 2 (f32 output) accumulates directly into the resident output
    # block; layer 1 (bf16 output) needs an f32 scratch accumulator.
    scratch_shapes = ([] if out_dtype == jnp.float32
                      else [pltpu.VMEM((tile_m, c_out), jnp.float32)])

    kernel = functools.partial(_gcn_layer_kernel, epilogue=epilogue,
                               n_valid_cols=n_valid_cols, tile_k=tile_k,
                               p_resident=p_resident)
    return pl.pallas_call(
        kernel,
        out_shape=jax.ShapeDtypeStruct((np_, c_out), out_dtype),
        grid_spec=pltpu.PrefetchScalarGridSpec(
            num_scalar_prefetch=0,
            grid=grid,
            in_specs=[
                # A_hat tiles dominate HBM traffic; bump to pipeline_mode=
                # pl.Buffered(3) if a profile still shows exposed DMA.
                pl.BlockSpec((tile_m, tile_k), lambda i, k: (i, k)),   # A_hat
                p_spec,                                                # P = X W
                pl.BlockSpec((1, c_out), lambda i, k: (0, 0)),         # bias
            ],
            out_specs=pl.BlockSpec((tile_m, c_out), lambda i, k: (i, 0)),
            scratch_shapes=scratch_shapes,
        ),
        compiler_params=pltpu.CompilerParams(
            dimension_semantics=("parallel", "arbitrary"),
            vmem_limit_bytes=_VMEM_LIMIT_BYTES,
        ),
    )(a_hat, p, b)


def gcn_normalized_adjacency_padded(edge_index, num_nodes, num_nodes_padded,
                                    out_dtype=jnp.bfloat16):
    """Padded dense A_hat = D^{-1/2} (A + I) D^{-1/2} from a [2, E] edge_index.

    Built directly at the padded size in the target dtype (single
    materialization; padded rows/cols stay zero). Duplicate edges are summed
    (matches PyG's per-edge message summation).
    TODO(synk): for realistically sparse graphs, replace the dense A_hat with
    a CSR/gather formulation (PrefetchScalarGridSpec + manual DMA) to avoid
    O(N^2) storage/traffic.
    """
    src = edge_index[0]
    dst = edge_index[1]
    a = jnp.zeros((num_nodes_padded, num_nodes_padded), jnp.float32)
    a = a.at[dst, src].add(1.0)                          # messages src -> dst
    diag = (jnp.arange(num_nodes_padded) < num_nodes).astype(jnp.float32)
    a = a + jnp.diag(diag)                               # self-loops, real nodes only
    deg = jnp.sum(a, axis=1)                             # in-degree incl. self-loop
    dinv = jnp.where(deg > 0, lax.rsqrt(deg), 0.0)
    return (dinv[:, None] * a * dinv[None, :]).astype(out_dtype)


def gnn_forward(x, edge_index, params):
    w1, b1, w2, b2 = params
    n, c_in = x.shape
    hid = w1.shape[1]
    c_out = w2.shape[1]

    np_, tile_m, tile_k = _choose_tiles(n)
    hid_p = _round_up(hid, 128)
    cout_p = _round_up(c_out, 128)

    # ---- padded bf16 normalized adjacency (JAX glue outside the kernel) ----
    a_p = gcn_normalized_adjacency_padded(edge_index, n, np_)

    # ---- layer-1 feature transform hoisted out of the streamed kernel ----
    # P1 = X @ W1 computed ONCE (cheap XLA matmul); padded to (Np, hid_p) bf16.
    p1 = jnp.dot(x.astype(jnp.bfloat16), w1.astype(jnp.bfloat16),
                 preferred_element_type=jnp.float32)
    p1_p = jnp.zeros((np_, hid_p), jnp.bfloat16).at[:n, :hid].set(
        p1.astype(jnp.bfloat16))
    b1_p = jnp.zeros((1, hid_p), jnp.float32).at[:, :hid].set(b1.reshape(1, -1))
    b2_p = jnp.zeros((1, cout_p), jnp.float32).at[:, :c_out].set(b2.reshape(1, -1))

    # layer 1: H = relu(A_hat @ P1 + b1)       (dropout == identity, eval)
    h = _gcn_layer(a_p, p1_p, b1_p, epilogue="relu",
                   n_valid_cols=hid, out_dtype=jnp.bfloat16,
                   tile_m=tile_m, tile_k=tile_k)

    # ---- layer-2 feature transform, also hoisted (P2 = H @ W2) ----
    w2_p = jnp.zeros((hid_p, cout_p), jnp.bfloat16).at[:hid, :c_out].set(
        w2.astype(jnp.bfloat16))
    p2 = jnp.dot(h, w2_p, preferred_element_type=jnp.float32).astype(jnp.bfloat16)

    # layer 2: log_softmax(A_hat @ P2 + b2, dim=1)
    out = _gcn_layer(a_p, p2, b2_p, epilogue="log_softmax",
                     n_valid_cols=c_out, out_dtype=jnp.float32,
                     tile_m=tile_m, tile_k=tile_k)
    return out[:n, :c_out]


def gnn_reference(x, edge_index, params):
    """Pure-JAX f32 reference for correctness checking."""
    w1, b1, w2, b2 = params
    n = x.shape[0]
    a = gcn_normalized_adjacency_padded(edge_index, n, n, jnp.float32)
    h = jnp.maximum(a @ (x @ w1) + b1, 0.0)
    z = a @ (h @ w2) + b2
    return jax.nn.log_softmax(z, axis=1)


def init_params(key, in_channels, hidden_channels, out_channels):
    k1, k2 = jax.random.split(key)
    s1 = (6.0 / (in_channels + hidden_channels)) ** 0.5
    s2 = (6.0 / (hidden_channels + out_channels)) ** 0.5
    w1 = jax.random.uniform(k1, (in_channels, hidden_channels), jnp.float32, -s1, s1)
    w2 = jax.random.uniform(k2, (hidden_channels, out_channels), jnp.float32, -s2, s2)
    b1 = jnp.zeros((1, hidden_channels), jnp.float32)
    b2 = jnp.zeros((1, out_channels), jnp.float32)
    return w1, b1, w2, b2


if __name__ == "__main__":
    key = jax.random.PRNGKey(0)
    kx, ke, kp = jax.random.split(key, 3)

    num_nodes = 16
    in_channels, hidden_channels, out_channels = 8, 32, 8
    num_edges = 40

    x = jax.random.normal(kx, (num_nodes, in_channels), jnp.float32)
    edge_index = jax.random.randint(ke, (2, num_edges), 0, num_nodes, jnp.int32)
    params = init_params(kp, in_channels, hidden_channels, out_channels)

    out = jax.jit(gnn_forward)(x, edge_index, params)
    out = jax.block_until_ready(out)

    assert out.shape == (num_nodes, out_channels)
    # log_softmax rows must sum (in prob space) to 1
    assert jnp.allclose(jnp.sum(jnp.exp(out), axis=1), 1.0, atol=1e-3)
    # loose check vs f32 reference (kernel runs the matmuls in bf16)
    ref = gnn_reference(x, edge_index, params)
    assert jnp.max(jnp.abs(out - ref)) < 0.1

    print("KERNEL_OK")
</pallas_src>

<mosaic_0001>
module attributes {stable_mosaic.version = 11 : i64} {
  func.func @_gcn_layer_kernel(%arg0: i32, %arg1: i32, %arg2: memref<128x256xbf16, #tpu.memory_space<vmem>>, %arg3: memref<256x128xbf16, #tpu.memory_space<vmem>>, %arg4: memref<1x128xf32, #tpu.memory_space<vmem>>, %arg5: memref<128x128xbf16, #tpu.memory_space<vmem>>, %arg6: memref<128x128xf32, #tpu.memory_space<vmem>>) attributes {dimension_semantics = [#tpu.dimension_semantics<parallel>, #tpu.dimension_semantics<arbitrary>], iteration_bounds = array<i64: 2, 1>, scalar_prefetch = 0 : i64, scratch_operands = 1 : i64, tpu.core_type = #tpu.core_type<tc>, window_params = [{transform_indices = @transform_0, window_bounds = array<i64: 128, 256>}, {pipeline_mode = #tpu.pipeline_mode<synchronous>, transform_indices = @transform_1, window_bounds = array<i64: 256, 128>}, {pipeline_mode = #tpu.pipeline_mode<synchronous>, transform_indices = @transform_2, window_bounds = array<i64: 1, 128>}, {transform_indices = @transform_3, window_bounds = array<i64: 128, 128>}]} {
    %c0_i32 = arith.constant 0 : i32
    %0 = arith.cmpi eq, %arg1, %c0_i32 : i32
    %1 = arith.extui %0 : i1 to i32
    %c0_i32_0 = arith.constant 0 : i32
    %2 = arith.cmpi ne, %1, %c0_i32_0 : i32
    scf.if %2 {
      %c0_9 = arith.constant 0 : index
      %c0_10 = arith.constant 0 : index
      %15 = vector.load %arg4[%c0_9, %c0_10] : memref<1x128xf32, #tpu.memory_space<vmem>>, vector<1x128xf32>
      %16 = vector.shape_cast %15 : vector<1x128xf32> to vector<1x128xf32>
      %17 = vector.broadcast %16 : vector<1x128xf32> to vector<128x128xf32>
      %c0_11 = arith.constant 0 : index
      %c0_12 = arith.constant 0 : index
      %18 = vector.load %arg6[%c0_11, %c0_12] : memref<128x128xf32, #tpu.memory_space<vmem>>, vector<128x128xf32>
      tpu.vector_store %arg6[%c0_11, %c0_12], %17 {strides = array<i32>} : memref<128x128xf32, #tpu.memory_space<vmem>>, vector<128x128xf32>,
    } else {
    }
    %c256_i32 = arith.constant 256 : i32
    %3 = arith.muli %arg1, %c256_i32 : i32
    %4 = tpu.assume_multiple %3, 256 : i32
    %5 = arith.index_cast %4 : i32 to index
    %c0 = arith.constant 0 : index
    %6 = vector.load %arg3[%5, %c0] : memref<256x128xbf16, #tpu.memory_space<vmem>>, vector<256x128xbf16>
    %c0_1 = arith.constant 0 : index
    %c0_2 = arith.constant 0 : index
    %7 = vector.load %arg6[%c0_1, %c0_2] : memref<128x128xf32, #tpu.memory_space<vmem>>, vector<128x128xf32>
    %c0_3 = arith.constant 0 : index
    %c0_4 = arith.constant 0 : index
    %8 = vector.load %arg2[%c0_3, %c0_4] : memref<128x256xbf16, #tpu.memory_space<vmem>>, vector<128x256xbf16>
    %cst = arith.constant dense<0.000000e+00> : vector<128x128xf32>
    %9 = tpu.matmul %8, %6, %cst {dimension_numbers = #tpu.dot_dimension_numbers<[1], [0], [0], [1], [0, 0, 1, 1], [], []>} : vector<128x256xbf16>, vector<256x128xbf16>, vector<128x128xf32> -> vector<128x128xf32>
    %10 = arith.addf %7, %9 : vector<128x128xf32>
    %c0_5 = arith.constant 0 : index
    %c0_6 = arith.constant 0 : index
    %11 = vector.load %arg6[%c0_5, %c0_6] : memref<128x128xf32, #tpu.memory_space<vmem>>, vector<128x128xf32>
    tpu.vector_store %arg6[%c0_5, %c0_6], %10 {strides = array<i32>} : memref<128x128xf32, #tpu.memory_space<vmem>>, vector<128x128xf32>,
    %c0_i32_7 = arith.constant 0 : i32
    %12 = arith.cmpi eq, %arg1, %c0_i32_7 : i32
    %13 = arith.extui %12 : i1 to i32
    %c0_i32_8 = arith.constant 0 : i32
    %14 = arith.cmpi ne, %13, %c0_i32_8 : i32
    scf.if %14 {
      %c0_9 = arith.constant 0 : index
      %c0_10 = arith.constant 0 : index
      %15 = vector.load %arg6[%c0_9, %c0_10] : memref<128x128xf32, #tpu.memory_space<vmem>>, vector<128x128xf32>
      %cst_11 = arith.constant 0.000000e+00 : f32
      %16 = vector.broadcast %cst_11 : f32 to vector<128x128xf32>
      %17 = arith.maximumf %15, %16 : vector<128x128xf32>
      %18 = arith.truncf %17 : vector<128x128xf32> to vector<128x128xbf16>
      %c0_12 = arith.constant 0 : index
      %c0_13 = arith.constant 0 : index
      %19 = vector.load %arg5[%c0_12, %c0_13] : memref<128x128xbf16, #tpu.memory_space<vmem>>, vector<128x128xbf16>
      tpu.vector_store %arg5[%c0_12, %c0_13], %18 {strides = array<i32>} : memref<128x128xbf16, #tpu.memory_space<vmem>>, vector<128x128xbf16>,
    } else {
    }
    return
  }
  func.func @transform_0(%arg0: i32, %arg1: i32) -> (i32, i32) {
    %c0_i32 = arith.constant 0 : i32
    return %arg0, %arg1 : i32, i32
  }
  func.func @transform_1(%arg0: i32, %arg1: i32) -> (i32, i32) {
    %c0_i32 = arith.constant 0 : i32
    %c0_i32_0 = arith.constant 0 : i32
    %c0_i32_1 = arith.constant 0 : i32
    return %c0_i32, %c0_i32_0 : i32, i32
  }
  func.func @transform_2(%arg0: i32, %arg1: i32) -> (i32, i32) {
    %c0_i32 = arith.constant 0 : i32
    %c0_i32_0 = arith.constant 0 : i32
    %c0_i32_1 = arith.constant 0 : i32
    return %c0_i32, %c0_i32_0 : i32, i32
  }
  func.func @transform_3(%arg0: i32, %arg1: i32) -> (i32, i32) {
    %c0_i32 = arith.constant 0 : i32
    %c0_i32_0 = arith.constant 0 : i32
    return %arg0, %c0_i32 : i32, i32
  }
}

module attributes {stable_mosaic.version = 11 : i64} {
  func.func @_gcn_layer_kernel(%arg0: i32, %arg1: i32, %arg2: memref<128x256xbf16, #tpu.memory_space<vmem>>, %arg3: memref<256x128xbf16, #tpu.memory_space<vmem>>, %arg4: memref<1x128xf32, #tpu.memory_space<vmem>>, %arg5: memref<128x128xf32, #tpu.memory_space<vmem>>) attributes {dimension_semantics = [#tpu.dimension_semantics<parallel>, #tpu.dimension_semantics<arbitrary>], iteration_bounds = array<i64: 2, 1>, scalar_prefetch = 0 : i64, scratch_operands = 0 : i64, tpu.core_type = #tpu.core_type<tc>, window_params = [{transform_indices = @transform_0, window_bounds = array<i64: 128, 256>}, {pipeline_mode = #tpu.pipeline_mode<synchronous>, transform_indices = @transform_1, window_bounds = array<i64: 256, 128>}, {pipeline_mode = #tpu.pipeline_mode<synchronous>, transform_indices = @transform_2, window_bounds = array<i64: 1, 128>}, {transform_indices = @transform_3, window_bounds = array<i64: 128, 128>}]} {
    %c0_i32 = arith.constant 0 : i32
    %0 = arith.cmpi eq, %arg1, %c0_i32 : i32
    %1 = arith.extui %0 : i1 to i32
    %c0_i32_0 = arith.constant 0 : i32
    %2 = arith.cmpi ne, %1, %c0_i32_0 : i32
    scf.if %2 {
      %c0_9 = arith.constant 0 : index
      %c0_10 = arith.constant 0 : index
      %15 = vector.load %arg4[%c0_9, %c0_10] : memref<1x128xf32, #tpu.memory_space<vmem>>, vector<1x128xf32>
      %16 = vector.shape_cast %15 : vector<1x128xf32> to vector<1x128xf32>
      %17 = vector.broadcast %16 : vector<1x128xf32> to vector<128x128xf32>
      %c0_11 = arith.constant 0 : index
      %c0_12 = arith.constant 0 : index
      %18 = vector.load %arg5[%c0_11, %c0_12] : memref<128x128xf32, #tpu.memory_space<vmem>>, vector<128x128xf32>
      tpu.vector_store %arg5[%c0_11, %c0_12], %17 {strides = array<i32>} : memref<128x128xf32, #tpu.memory_space<vmem>>, vector<128x128xf32>,
    } else {
    }
    %c256_i32 = arith.constant 256 : i32
    %3 = arith.muli %arg1, %c256_i32 : i32
    %4 = tpu.assume_multiple %3, 256 : i32
    %5 = arith.index_cast %4 : i32 to index
    %c0 = arith.constant 0 : index
    %6 = vector.load %arg3[%5, %c0] : memref<256x128xbf16, #tpu.memory_space<vmem>>, vector<256x128xbf16>
    %c0_1 = arith.constant 0 : index
    %c0_2 = arith.constant 0 : index
    %7 = vector.load %arg5[%c0_1, %c0_2] : memref<128x128xf32, #tpu.memory_space<vmem>>, vector<128x128xf32>
    %c0_3 = arith.constant 0 : index
    %c0_4 = arith.constant 0 : index
    %8 = vector.load %arg2[%c0_3, %c0_4] : memref<128x256xbf16, #tpu.memory_space<vmem>>, vector<128x256xbf16>
    %cst = arith.constant dense<0.000000e+00> : vector<128x128xf32>
    %9 = tpu.matmul %8, %6, %cst {dimension_numbers = #tpu.dot_dimension_numbers<[1], [0], [0], [1], [0, 0, 1, 1], [], []>} : vector<128x256xbf16>, vector<256x128xbf16>, vector<128x128xf32> -> vector<128x128xf32>
    %10 = arith.addf %7, %9 : vector<128x128xf32>
    %c0_5 = arith.constant 0 : index
    %c0_6 = arith.constant 0 : index
    %11 = vector.load %arg5[%c0_5, %c0_6] : memref<128x128xf32, #tpu.memory_space<vmem>>, vector<128x128xf32>
    tpu.vector_store %arg5[%c0_5, %c0_6], %10 {strides = array<i32>} : memref<128x128xf32, #tpu.memory_space<vmem>>, vector<128x128xf32>,
    %c0_i32_7 = arith.constant 0 : i32
    %12 = arith.cmpi eq, %arg1, %c0_i32_7 : i32
    %13 = arith.extui %12 : i1 to i32
    %c0_i32_8 = arith.constant 0 : i32
    %14 = arith.cmpi ne, %13, %c0_i32_8 : i32
    scf.if %14 {
      %c0_9 = arith.constant 0 : index
      %c0_10 = arith.constant 0 : index
      %15 = vector.load %arg5[%c0_9, %c0_10] : memref<128x128xf32, #tpu.memory_space<vmem>>, vector<128x128xf32>
      %16 = tpu.iota {dimensions = array<i32: 1>} : vector<128x128xi32>
      %c8_i32 = arith.constant 8 : i32
      %17 = vector.broadcast %c8_i32 : i32 to vector<128x128xi32>
      %18 = arith.cmpi slt, %16, %17 : vector<128x128xi32>
      %cst_11 = arith.constant 0xFF800000 : f32
      %19 = vector.broadcast %cst_11 : f32 to vector<128x128xf32>
      %20 = arith.select %18, %15, %19 : vector<128x128xi1>, vector<128x128xf32>
      %cst_12 = arith.constant dense<0xFF800000> : vector<128xf32>
      %21 = vector.multi_reduction <maximumf>, %20, %cst_12 [1] : vector<128x128xf32> to vector<128xf32>
      %22 = vector.shape_cast %21 : vector<128xf32> to vector<128x1xf32>
      %23 = vector.broadcast %22 : vector<128x1xf32> to vector<128x128xf32>
      %24 = arith.subf %15, %23 : vector<128x128xf32>
      %25 = math.exp %24 : vector<128x128xf32>
      %cst_13 = arith.constant 0.000000e+00 : f32
      %26 = vector.broadcast %cst_13 : f32 to vector<128x128xf32>
      %27 = arith.select %18, %25, %26 : vector<128x128xi1>, vector<128x128xf32>
      %cst_14 = arith.constant dense<0.000000e+00> : vector<128xf32>
      %28 = vector.multi_reduction <add>, %27, %cst_14 [1] : vector<128x128xf32> to vector<128xf32>
      %29 = vector.shape_cast %28 : vector<128xf32> to vector<128x1xf32>
      %30 = math.log %29 : vector<128x1xf32>
      %31 = vector.broadcast %22 : vector<128x1xf32> to vector<128x128xf32>
      %32 = arith.subf %15, %31 : vector<128x128xf32>
      %33 = vector.broadcast %30 : vector<128x1xf32> to vector<128x128xf32>
      %34 = arith.subf %32, %33 : vector<128x128xf32>
      %c0_15 = arith.constant 0 : index
      %c0_16 = arith.constant 0 : index
      %35 = vector.load %arg5[%c0_15, %c0_16] : memref<128x128xf32, #tpu.memory_space<vmem>>, vector<128x128xf32>
      tpu.vector_store %arg5[%c0_15, %c0_16], %34 {strides = array<i32>} : memref<128x128xf32, #tpu.memory_space<vmem>>, vector<128x128xf32>,
    } else {
    }
    return
  }
  func.func @transform_0(%arg0: i32, %arg1: i32) -> (i32, i32) {
    %c0_i32 = arith.constant 0 : i32
    return %arg0, %arg1 : i32, i32
  }
  func.func @transform_1(%arg0: i32, %arg1: i32) -> (i32, i32) {
    %c0_i32 = arith.constant 0 : i32
    %c0_i32_0 = arith.constant 0 : i32
    %c0_i32_1 = arith.constant 0 : i32
    return %c0_i32, %c0_i32_0 : i32, i32
  }
  func.func @transform_2(%arg0: i32, %arg1: i32) -> (i32, i32) {
    %c0_i32 = arith.constant 0 : i32
    %c0_i32_0 = arith.constant 0 : i32
    %c0_i32_1 = arith.constant 0 : i32
    return %c0_i32, %c0_i32_0 : i32, i32
  }
  func.func @transform_3(%arg0: i32, %arg1: i32) -> (i32, i32) {
    %c0_i32 = arith.constant 0 : i32
    %c0_i32_0 = arith.constant 0 : i32
    return %arg0, %c0_i32 : i32, i32
  }
}

</mosaic_0001>

<llo_original>
// kernel: gnn_forward.2
$region0: #{gnn_forward.2}
  #allocation0 [shape = 'u32[]', space=smem, size = 0x4, offset = 0x4, fixed_abs, tag = 'smem constant byte address 0x4 - core index']
  #allocation1 [shape = 'u32[72,128]{1,0:T(1,128)}', space=vmem, size = 0x9000, scoped, tag = 'internal scratch']
  #allocation2 [shape = 'f32[128,128]{1,0:T(8,128)}', space=vmem, size = 0x10000, scoped, tag = 'scratch operand']
  %s0 = inlined_call_operand.vmem [shape: bf16[256,256], index: 0, kind: input, shape index: {}]
  %s1 = inlined_call_operand.vmem [shape: bf16[256,128], index: 1, kind: input, shape index: {}]
  %s2 = inlined_call_operand.vmem [shape: f32[1,128], index: 2, kind: input, shape index: {}]
  %s3 = inlined_call_operand.vmem [shape: bf16[256,128], index: 3, kind: output, shape index: {}]
  %s4 = sld [smem:[#allocation0]]
  $region53: #{gnn_forward.2} parent=0
    _
  %s6 = ssub.s32 1, %s4
  %s7 = scalar_select 0, %s6, %s4
  loop: start=0, step=1, limit=4
  $region2: #{gnn_forward.2} parent=0 // loop_pre_header
    _
  $region3: #{gnn_forward.2} parent=0 // loop_header
    %s9 = sphi 0, %s13
    %p10 = scmp.ge.s32.totalorder %s9, 4
    %s16 = sphi 0, %s28
    %s17 = sphi 0, %s24
    %s18 = sphi 0, %s16
    %s19 = sphi 0, %s17
    %s20 = sphi 0, %s18
    %s21 = sphi 0, %s19
    %s33 = sphi 0, %s35
    %s36 = sphi 0, %s33
    %s37 = sphi 0, %s36
    %s53 = sphi 0, %s37
    %s57 = sphi 0, %s57
    %s59 = sphi 0, %s57
    %s60 = sphi 0, %s59
    %s74 = sphi 0, %s60
    %s78 = sphi 0, %s78
    %s80 = sphi 0, %s78
    %s81 = sphi 0, %s80
    %s95 = sphi 0, %s81
    %s101 = sphi 0, %s103
    %s104 = sphi 0, %s101
    %s105 = sphi 0, %s104
    %s121 = sphi 0, %s105
  $region4: #{gnn_forward.2} parent=0 // loop_header_branch
    %12 = sbr.rel (%p10) target = $region8
  $region5: #{gnn_forward.2} parent=0 // loop_body
    %s14 = ssub.s32 %s9, 1
    %s15 = ssub.s32 %s9, 2
    %s22 = sadd.s32 1, %s17
    %p23 = scmp.ge.s32.totalorder %s22, 1
    %s24 = scalar_select %p23, 0, %s22
    %s25 = sadd.s32 1, %s16
    %s26 = scalar_select %p23, %s25, %s16
    %p27 = scmp.ge.s32.totalorder %s26, 2
    %s28 = scalar_select %p27, 0, %s26
    %s29 = ssub.s32 %s16, %s28
    %s30 = ssub.s32 %s17, %s24
    %s31 = sor.u32 %s29, %s30
    %p32 = scmp.eq.s32.totalorder %s31, 0
    %s34 = sadd.s32 %s33, 1
    %s35 = scalar_select %p32, %s33, %s34
    %p38 = pneg %p32
    %p39 = scmp.eq.s32.totalorder %s9, 1
    %p40 = por %p38, %p39
    %p41 = scmp.ne.s32.totalorder %s33, %s36
    %p42 = scmp.eq.s32.totalorder %s9, 0
    %p43 = por %p41, %p42
    %p44 = scmp.ne.s32.totalorder %s33, %s36
    %p45 = scmp.eq.s32.totalorder %s14, 1
    %p46 = por %p44, %p45
    %p47 = scmp.ne.s32.totalorder %s36, %s37
    %p48 = scmp.eq.s32.totalorder %s14, 0
    %p49 = por %p47, %p48
    %p50 = scmp.ne.s32.totalorder %s36, %s37
    %p51 = scmp.eq.s32.totalorder %s15, 1
    %p52 = por %p50, %p51
    %p54 = scmp.ne.s32.totalorder %s37, %s53
    %p55 = scmp.eq.s32.totalorder %s15, 0
    %p56 = por %p54, %p55
    %s58 = sadd.s32 %s57, 1
    %p61 = scmp.eq.s32.totalorder %s9, 1
    %p62 = scmp.ne.s32.totalorder %s57, %s59
    %p63 = scmp.eq.s32.totalorder %s9, 0
    %p64 = por %p62, %p63
    %p65 = scmp.ne.s32.totalorder %s57, %s59
    %p66 = scmp.eq.s32.totalorder %s14, 1
    %p67 = por %p65, %p66
    %p68 = scmp.ne.s32.totalorder %s59, %s60
    %p69 = scmp.eq.s32.totalorder %s14, 0
    %p70 = por %p68, %p69
    %p71 = scmp.ne.s32.totalorder %s59, %s60
    %p72 = scmp.eq.s32.totalorder %s15, 1
    %p73 = por %p71, %p72
    %p75 = scmp.ne.s32.totalorder %s60, %s74
    %p76 = scmp.eq.s32.totalorder %s15, 0
    %p77 = por %p75, %p76
    %s79 = sadd.s32 %s78, 1
    %p82 = scmp.eq.s32.totalorder %s9, 1
    %p83 = scmp.ne.s32.totalorder %s78, %s80
    %p84 = scmp.eq.s32.totalorder %s9, 0
    %p85 = por %p83, %p84
    %p86 = scmp.ne.s32.totalorder %s78, %s80
    %p87 = scmp.eq.s32.totalorder %s14, 1
    %p88 = por %p86, %p87
    %p89 = scmp.ne.s32.totalorder %s80, %s81
    %p90 = scmp.eq.s32.totalorder %s14, 0
    %p91 = por %p89, %p90
    %p92 = scmp.ne.s32.totalorder %s80, %s81
    %p93 = scmp.eq.s32.totalorder %s15, 1
    %p94 = por %p92, %p93
    %p96 = scmp.ne.s32.totalorder %s81, %s95
    %p97 = scmp.eq.s32.totalorder %s15, 0
    %p98 = por %p96, %p97
    %s99 = ssub.s32 %s16, %s28
    %p100 = scmp.eq.s32.totalorder %s99, 0
    %s102 = sadd.s32 %s101, 1
    %s103 = scalar_select %p100, %s101, %s102
    %p106 = pneg %p100
    %p107 = scmp.eq.s32.totalorder %s9, 1
    %p108 = por %p106, %p107
    %p109 = scmp.ne.s32.totalorder %s101, %s104
    %p110 = scmp.eq.s32.totalorder %s9, 0
    %p111 = por %p109, %p110
    %p112 = scmp.ne.s32.totalorder %s101, %s104
    %p113 = scmp.eq.s32.totalorder %s14, 1
    %p114 = por %p112, %p113
    %p115 = scmp.ne.s32.totalorder %s104, %s105
    %p116 = scmp.eq.s32.totalorder %s14, 0
    %p117 = por %p115, %p116
    %p118 = scmp.ne.s32.totalorder %s104, %s105
    %p119 = scmp.eq.s32.totalorder %s15, 1
    %p120 = por %p118, %p119
    %p122 = scmp.ne.s32.totalorder %s105, %s121
    %p123 = scmp.eq.s32.totalorder %s15, 0
    %p124 = por %p122, %p123
    %p125 = scmp.le.s32.totalorder 1, %s9
    %p126 = scmp.lt.s32.totalorder %s9, 3
    %p127 = pnand %p125, %p126
    %p128 = pneg %p127
    // Predicated region
    $region9: #{gnn_forward.2} parent=5 // pred_check
      _
    $region10: #{gnn_forward.2} parent=5 // pred_check_branch
      %130 = sbr.rel (%p127) target = $region12
    $region11: #{gnn_forward.2} parent=5 // pred_region
      %s131 = ssub.s32 %s9, 1
      // Predicated region
      $region13: #{gnn_forward.2} parent=11 // pred_check
        %p132 = pneg %p70
      $region14: #{gnn_forward.2} parent=11 // pred_check_branch
        %134 = sbr.rel (%p132) target = $region16
      $region15: #{gnn_forward.2} parent=11 // pred_region
        _
      $region16: #{gnn_forward.2} parent=11 // pred_fallthru
        _
      // Predicated region
      $region17: #{gnn_forward.2} parent=11 // pred_check
        %p135 = pneg %p91
      $region18: #{gnn_forward.2} parent=11 // pred_check_branch
        %137 = sbr.rel (%p135) target = $region20
      $region19: #{gnn_forward.2} parent=11 // pred_region
        _
      $region20: #{gnn_forward.2} parent=11 // pred_fallthru
        _
    $region12: #{gnn_forward.2} parent=5 // pred_fallthru
      _
    %p138 = scmp.lt.s32.totalorder %s9, 2
    // Predicated region
    $region21: #{gnn_forward.2} parent=5 // pred_check
      %p139 = pneg %p138
    $region22: #{gnn_forward.2} parent=5 // pred_check_branch
      %141 = sbr.rel (%p139) target = $region24
    $region23: #{gnn_forward.2} parent=5 // pred_region
      // Predicated region
      $region25: #{gnn_forward.2} parent=23 // pred_check
        %p142 = pneg %p43
      $region26: #{gnn_forward.2} parent=23 // pred_check_branch
        %144 = sbr.rel (%p142) target = $region28
      $region27: #{gnn_forward.2} parent=23 // pred_region
        %s145 = smul.u32 16, %s16
        %s146 = smul.u32 2, %s17
        %p147 = scmp.lt.s32.totalorder %s145, 31
        %s148 = scalar_select %p147, %s145, 31
        %p149 = scmp.lt.s32.totalorder %s146, 1
        %s150 = scalar_select %p149, %s146, 1
        %s151 = smul.addr %s148, 2
        %s152 = sadd.s32 %s150, %s151
        %s153 = smul.addr %s152, 4
        %s154 = scalar_lea.vmem %s0, %s153
        %s155 = smul.u32 16, %s16
        %s156 = smul.u32 2, %s17
      $region28: #{gnn_forward.2} parent=23 // pred_fallthru
        _
    $region24: #{gnn_forward.2} parent=5 // pred_fallthru
      _
    %p157 = scmp.le.s32.totalorder 1, %s9
    %p158 = scmp.lt.s32.totalorder %s9, 3
    %p159 = pnand %p157, %p158
    %p160 = pneg %p159
    // Predicated region
    $region29: #{gnn_forward.2} parent=5 // pred_check
      _
    $region30: #{gnn_forward.2} parent=5 // pred_check_branch
      %162 = sbr.rel (%p159) target = $region32
    $region31: #{gnn_forward.2} parent=5 // pred_region
      %s163 = ssub.s32 %s9, 1
      %s164 = smul.u32 16, %s18
      %s165 = smul.u32 2, %s19
      %p166 = scmp.lt.s32.totalorder %s164, 31
      %s167 = scalar_select %p166, %s164, 31
      %p168 = scmp.lt.s32.totalorder %s165, 1
      %s169 = scalar_select %p168, %s165, 1
      %s170 = smul.addr %s167, 2
      %s171 = sadd.s32 %s169, %s170
      %s172 = smul.addr %s171, 4
      %s173 = scalar_lea.vmem %s0, %s172
      %p174 = pneg %p49
      %p175 = pneg %p46
      %p176 = pneg %p70
      %p177 = pneg %p67
      %p178 = pneg %p91
      %p179 = pneg %p88
      %p180 = pneg %p117
      %p181 = pneg %p114
      %s182 = smul.u32 16, %s18
      %p183 = scmp.lt.s32.totalorder %s182, 31
      %s184 = scalar_select %p183, %s182, 31
      %s185 = smul.addr %s184, 4
      %s186 = scalar_lea.vmem %s3, %s185
      %s187 = smul.u32 16, %s18
      %s188 = smul.u32 2, %s19
      %p189 = scmp.lt.s32.totalorder %s187, 31
      %s190 = scalar_select %p189, %s187, 31
      %p191 = scmp.lt.s32.totalorder %s188, 1
      %s192 = scalar_select %p191, %s188, 1
      %s193 = smul.addr %s190, 2
      %s194 = sadd.s32 %s192, %s193
      %s195 = smul.addr %s194, 4
      %s196 = scalar_lea.vmem %s0, %s195
      %s197 = smul.u32 16, %s18
      %s198 = smul.u32 2, %s19
      %s199 = smul.u32 16, %s18
      %p200 = scmp.lt.s32.totalorder %s199, 31
      %s201 = scalar_select %p200, %s199, 31
      %s202 = smul.addr %s201, 4
      %s203 = scalar_lea.vmem %s3, %s202
      %s204 = smul.u32 16, %s18
      %p205 = scmp.eq.s32.totalorder %s19, 0
      // Predicated region
      $region33: #{gnn_forward.2} parent=31 // pred_check
        %p206 = pneg %p205
      $region34: #{gnn_forward.2} parent=31 // pred_check_branch
        %208 = sbr.rel (%p206) target = $region36
      $region35: #{gnn_forward.2} parent=31 // pred_region
        %v209 = vld [vmem:[%s2] sm:$0x1]
        %v211 = vperm.slane %v209, 0
        %213 = vst [vmem:[#allocation2] sm:$0xff] %v211
        %214 = vst [vmem:[#allocation2 + $0x8] sm:$0xff] %v211
        %215 = vst [vmem:[#allocation2 + $0x10] sm:$0xff] %v211
        %216 = vst [vmem:[#allocation2 + $0x18] sm:$0xff] %v211
        %217 = vst [vmem:[#allocation2 + $0x20] sm:$0xff] %v211
        %218 = vst [vmem:[#allocation2 + $0x28] sm:$0xff] %v211
        %219 = vst [vmem:[#allocation2 + $0x30] sm:$0xff] %v211
        %220 = vst [vmem:[#allocation2 + $0x38] sm:$0xff] %v211
        %221 = vst [vmem:[#allocation2 + $0x40] sm:$0xff] %v211
        %222 = vst [vmem:[#allocation2 + $0x48] sm:$0xff] %v211
        %223 = vst [vmem:[#allocation2 + $0x50] sm:$0xff] %v211
        %224 = vst [vmem:[#allocation2 + $0x58] sm:$0xff] %v211
        %225 = vst [vmem:[#allocation2 + $0x60] sm:$0xff] %v211
        %226 = vst [vmem:[#allocation2 + $0x68] sm:$0xff] %v211
        %227 = vst [vmem:[#allocation2 + $0x70] sm:$0xff] %v211
        %228 = vst [vmem:[#allocation2 + $0x78] sm:$0xff] %v211
      $region36: #{gnn_forward.2} parent=31 // pred_fallthru
        _
      %s229 = smul.u32 %s19, 256
      %s230 = sshra.s32 %s229, 3
      %s231 = sand.u32 %s229, 7
      %s232 = smul.addr %s230, 4
      %s233 = scalar_lea.vmem %s1, %s232
      %v234 = vld [vmem:[%s233] sm:$0xf]
      %v235 = vld [vmem:[%s233 + $0x4] sm:$0xf]
      %v236 = vld [vmem:[%s233 + $0x8] sm:$0xf]
      %v237 = vld [vmem:[%s233 + $0xc] sm:$0xf]
      %v238 = vld [vmem:[%s233 + $0x10] sm:$0xf]
      %v239 = vld [vmem:[%s233 + $0x14] sm:$0xf]
      %v240 = vld [vmem:[%s233 + $0x18] sm:$0xf]
      %v241 = vld [vmem:[%s233 + $0x1c] sm:$0xf]
      %v242 = vld [vmem:[%s233 + $0x20] sm:$0xf]
      %v243 = vld [vmem:[%s233 + $0x24] sm:$0xf]
      %v244 = vld [vmem:[%s233 + $0x28] sm:$0xf]
      %v245 = vld [vmem:[%s233 + $0x2c] sm:$0xf]
      %v246 = vld [vmem:[%s233 + $0x30] sm:$0xf]
      %v247 = vld [vmem:[%s233 + $0x34] sm:$0xf]
      %v248 = vld [vmem:[%s233 + $0x38] sm:$0xf]
      %v249 = vld [vmem:[%s233 + $0x3c] sm:$0xf]
      %v250 = vld [vmem:[%s233 + $0x40] sm:$0xf]
      %v251 = vld [vmem:[%s233 + $0x44] sm:$0xf]
      %v252 = vld [vmem:[%s233 + $0x48] sm:$0xf]
      %v253 = vld [vmem:[%s233 + $0x4c] sm:$0xf]
      %v254 = vld [vmem:[%s233 + $0x50] sm:$0xf]
      %v255 = vld [vmem:[%s233 + $0x54] sm:$0xf]
      %v256 = vld [vmem:[%s233 + $0x58] sm:$0xf]
      %v257 = vld [vmem:[%s233 + $0x5c] sm:$0xf]
      %v258 = vld [vmem:[%s233 + $0x60] sm:$0xf]
      %v259 = vld [vmem:[%s233 + $0x64] sm:$0xf]
      %v260 = vld [vmem:[%s233 + $0x68] sm:$0xf]
      %v261 = vld [vmem:[%s233 + $0x6c] sm:$0xf]
      %v262 = vld [vmem:[%s233 + $0x70] sm:$0xf]
      %v263 = vld [vmem:[%s233 + $0x74] sm:$0xf]
      %v264 = vld [vmem:[%s233 + $0x78] sm:$0xf]
      %v265 = vld [vmem:[%s233 + $0x7c] sm:$0xf]
      %v266 = vld [vmem:[#allocation2] sm:$0xff]
      %v267 = vld [vmem:[#allocation2 + $0x8] sm:$0xff]
      %v268 = vld [vmem:[#allocation2 + $0x10] sm:$0xff]
      %v269 = vld [vmem:[#allocation2 + $0x18] sm:$0xff]
      %v270 = vld [vmem:[#allocation2 + $0x20] sm:$0xff]
      %v271 = vld [vmem:[#allocation2 + $0x28] sm:$0xff]
      %v272 = vld [vmem:[#allocation2 + $0x30] sm:$0xff]
      %v273 = vld [vmem:[#allocation2 + $0x38] sm:$0xff]
      %v274 = vld [vmem:[#allocation2 + $0x40] sm:$0xff]
      %v275 = vld [vmem:[#allocation2 + $0x48] sm:$0xff]
      %v276 = vld [vmem:[#allocation2 + $0x50] sm:$0xff]
      %v277 = vld [vmem:[#allocation2 + $0x58] sm:$0xff]
      %v278 = vld [vmem:[#allocation2 + $0x60] sm:$0xff]
      %v279 = vld [vmem:[#allocation2 + $0x68] sm:$0xff]
      %v280 = vld [vmem:[#allocation2 + $0x70] sm:$0xff]
      %v281 = vld [vmem:[#allocation2 + $0x78] sm:$0xff]
      %v282 = vld [vmem:[%s196] sm:$0xff]
      %v283 = vld [vmem:[%s196 + $0x8] sm:$0xff]
      %v284 = vld [vmem:[%s196 + $0x10] sm:$0xff]
      %v285 = vld [vmem:[%s196 + $0x18] sm:$0xff]
      %v286 = vld [vmem:[%s196 + $0x20] sm:$0xff]
      %v287 = vld [vmem:[%s196 + $0x28] sm:$0xff]
      %v288 = vld [vmem:[%s196 + $0x30] sm:$0xff]
      %v289 = vld [vmem:[%s196 + $0x38] sm:$0xff]
      %v290 = vld [vmem:[%s196 + $0x40] sm:$0xff]
      %v291 = vld [vmem:[%s196 + $0x48] sm:$0xff]
      %v292 = vld [vmem:[%s196 + $0x50] sm:$0xff]
      %v293 = vld [vmem:[%s196 + $0x58] sm:$0xff]
      %v294 = vld [vmem:[%s196 + $0x60] sm:$0xff]
      %v295 = vld [vmem:[%s196 + $0x68] sm:$0xff]
      %v296 = vld [vmem:[%s196 + $0x70] sm:$0xff]
      %v297 = vld [vmem:[%s196 + $0x78] sm:$0xff]
      %v314 = vunpack.c.l.b16 %v282
      %v315 = vunpack.c.h.b16 %v282
      %v316 = vunpack.c.l.b16 %v283
      %v317 = vunpack.c.h.b16 %v283
      %v318 = vunpack.c.l.b16 %v284
      %v319 = vunpack.c.h.b16 %v284
      %v320 = vunpack.c.l.b16 %v285
      %v321 = vunpack.c.h.b16 %v285
      %v322 = vunpack.c.l.b16 %v286
      %v323 = vunpack.c.h.b16 %v286
      %v324 = vunpack.c.l.b16 %v287
      %v325 = vunpack.c.h.b16 %v287
      %v326 = vunpack.c.l.b16 %v288
      %v327 = vunpack.c.h.b16 %v288
      %v328 = vunpack.c.l.b16 %v289
      %v329 = vunpack.c.h.b16 %v289
      %v330 = vunpack.c.l.b16 %v290
      %v331 = vunpack.c.h.b16 %v290
      %v332 = vunpack.c.l.b16 %v291
      %v333 = vunpack.c.h.b16 %v291
      %v334 = vunpack.c.l.b16 %v292
      %v335 = vunpack.c.h.b16 %v292
      %v336 = vunpack.c.l.b16 %v293
      %v337 = vunpack.c.h.b16 %v293
      %v338 = vunpack.c.l.b16 %v294
      %v339 = vunpack.c.h.b16 %v294
      %v340 = vunpack.c.l.b16 %v295
      %v341 = vunpack.c.h.b16 %v295
      %v342 = vunpack.c.l.b16 %v296
      %v343 = vunpack.c.h.b16 %v296
      %v344 = vunpack.c.l.b16 %v297
      %v345 = vunpack.c.h.b16 %v297
      %v346 = vpack.c.b16 %v316, %v314
      %v347 = vpack.c.b16 %v317, %v315
      %v348 = vpack.c.b16 %v320, %v318
      %v349 = vpack.c.b16 %v321, %v319
      %v350 = vpack.c.b16 %v324, %v322
      %v351 = vpack.c.b16 %v325, %v323
      %v352 = vpack.c.b16 %v328, %v326
      %v353 = vpack.c.b16 %v329, %v327
      %v354 = vpack.c.b16 %v332, %v330
      %v355 = vpack.c.b16 %v333, %v331
      %v356 = vpack.c.b16 %v336, %v334
      %v357 = vpack.c.b16 %v337, %v335
      %v358 = vpack.c.b16 %v340, %v338
      %v359 = vpack.c.b16 %v341, %v339
      %v360 = vpack.c.b16 %v344, %v342
      %v361 = vpack.c.b16 %v345, %v343
      %v410 = vunpack.c.l.b16 %v234
      %v411 = vunpack.c.l.b16 %v235
      %v412 = vunpack.c.l.b16 %v236
      %v413 = vunpack.c.l.b16 %v237
      %v414 = vunpack.c.l.b16 %v238
      %v415 = vunpack.c.l.b16 %v239
      %v416 = vunpack.c.l.b16 %v240
      %v417 = vunpack.c.l.b16 %v241
      %v418 = vunpack.c.l.b16 %v242
      %v419 = vunpack.c.l.b16 %v243
      %v420 = vunpack.c.l.b16 %v244
      %v421 = vunpack.c.l.b16 %v245
      %v422 = vunpack.c.l.b16 %v246
      %v423 = vunpack.c.l.b16 %v247
      %v424 = vunpack.c.l.b16 %v248
      %v425 = vunpack.c.l.b16 %v249
      %v426 = vunpack.c.l.b16 %v250
      %v427 = vunpack.c.l.b16 %v251
      %v428 = vunpack.c.l.b16 %v252
      %v429 = vunpack.c.l.b16 %v253
      %v430 = vunpack.c.l.b16 %v254
      %v431 = vunpack.c.l.b16 %v255
      %v432 = vunpack.c.l.b16 %v256
      %v433 = vunpack.c.l.b16 %v257
      %v434 = vunpack.c.l.b16 %v258
      %v435 = vunpack.c.l.b16 %v259
      %v436 = vunpack.c.l.b16 %v260
      %v437 = vunpack.c.l.b16 %v261
      %v438 = vunpack.c.l.b16 %v262
      %v439 = vunpack.c.l.b16 %v263
      %v440 = vunpack.c.l.b16 %v264
      %v441 = vunpack.c.l.b16 %v265
      %v442 = vpack.c.b16 %v411, %v410
      %v443 = vpack.c.b16 %v413, %v412
      %v444 = vpack.c.b16 %v415, %v414
      %v445 = vpack.c.b16 %v417, %v416
      %v446 = vpack.c.b16 %v419, %v418
      %v447 = vpack.c.b16 %v421, %v420
      %v448 = vpack.c.b16 %v423, %v422
      %v449 = vpack.c.b16 %v425, %v424
      %v450 = vpack.c.b16 %v427, %v426
      %v451 = vpack.c.b16 %v429, %v428
      %v452 = vpack.c.b16 %v431, %v430
      %v453 = vpack.c.b16 %v433, %v432
      %v454 = vpack.c.b16 %v435, %v434
      %v455 = vpack.c.b16 %v437, %v436
      %v456 = vpack.c.b16 %v439, %v438
      %v457 = vpack.c.b16 %v441, %v440
      %474 = vmatpush.bf16.msra.mxu0 %v449
      %475 = vmatpush.bf16.msra.mxu0 %v448
      %476 = vmatpush.bf16.msra.mxu0 %v447
      %477 = vmatpush.bf16.msra.mxu0 %v446
      %478 = vmatpush.bf16.msra.mxu0 %v445
      %479 = vmatpush.bf16.msra.mxu0 %v444
      %480 = vmatpush.bf16.msra.mxu0 %v443
      %481 = vmatpush.bf16.msra.mxu0 %v442
      %482 = vmatmul.bf16.gmra.mxu0 %v346
      %v483 = vpop.f32.mrf.mxu0
      %v484 = vadd.f32 0.0, %v483
      %v485 = vpop.f32.mrf.mxu0
      %v486 = vadd.f32 0.0, %v485
      %487 = vmatmul.bf16.gmra.mxu0 %v348
      %v488 = vpop.f32.mrf.mxu0
      %v489 = vadd.f32 0.0, %v488
      %v490 = vpop.f32.mrf.mxu0
      %v491 = vadd.f32 0.0, %v490
      %492 = vmatmul.bf16.gmra.mxu0 %v350
      %v493 = vpop.f32.mrf.mxu0
      %v494 = vadd.f32 0.0, %v493
      %v495 = vpop.f32.mrf.mxu0
      %v496 = vadd.f32 0.0, %v495
      %497 = vmatmul.bf16.gmra.mxu0 %v352
      %v498 = vpop.f32.mrf.mxu0
      %v499 = vadd.f32 0.0, %v498
      %v500 = vpop.f32.mrf.mxu0
      %v501 = vadd.f32 0.0, %v500
      %502 = vmatmul.bf16.gmra.mxu0 %v354
      %v503 = vpop.f32.mrf.mxu0
      %v504 = vadd.f32 0.0, %v503
      %v505 = vpop.f32.mrf.mxu0
      %v506 = vadd.f32 0.0, %v505
      %507 = vmatmul.bf16.gmra.mxu0 %v356
      %v508 = vpop.f32.mrf.mxu0
      %v509 = vadd.f32 0.0, %v508
      %v510 = vpop.f32.mrf.mxu0
      %v511 = vadd.f32 0.0, %v510
      %512 = vmatmul.bf16.gmra.mxu0 %v358
      %v513 = vpop.f32.mrf.mxu0
      %v514 = vadd.f32 0.0, %v513
      %v515 = vpop.f32.mrf.mxu0
      %v516 = vadd.f32 0.0, %v515
      %517 = vmatmul.bf16.gmra.mxu0 %v360
      %v518 = vpop.f32.mrf.mxu0
      %v519 = vadd.f32 0.0, %v518
      %v520 = vpop.f32.mrf.mxu0
      %v521 = vadd.f32 0.0, %v520
      %522 = vdwg.mxu0
      %523 = vmatpush.bf16.msra.mxu0 %v457
      %524 = vmatpush.bf16.msra.mxu0 %v456
      %525 = vmatpush.bf16.msra.mxu0 %v455
      %526 = vmatpush.bf16.msra.mxu0 %v454
      %527 = vmatpush.bf16.msra.mxu0 %v453
      %528 = vmatpush.bf16.msra.mxu0 %v452
      %529 = vmatpush.bf16.msra.mxu0 %v451
      %530 = vmatpush.bf16.msra.mxu0 %v450
      %531 = vmatmul.bf16.gmra.mxu0 %v347
      %v532 = vpop.f32.mrf.mxu0
      %v533 = vadd.f32 %v484, %v532
      %v534 = vpop.f32.mrf.mxu0
      %v535 = vadd.f32 %v486, %v534
      %536 = vmatmul.bf16.gmra.mxu0 %v349
      %v537 = vpop.f32.mrf.mxu0
      %v538 = vadd.f32 %v489, %v537
      %v539 = vpop.f32.mrf.mxu0
      %v540 = vadd.f32 %v491, %v539
      %541 = vmatmul.bf16.gmra.mxu0 %v351
      %v542 = vpop.f32.mrf.mxu0
      %v543 = vadd.f32 %v494, %v542
      %v544 = vpop.f32.mrf.mxu0
      %v545 = vadd.f32 %v496, %v544
      %546 = vmatmul.bf16.gmra.mxu0 %v353
      %v547 = vpop.f32.mrf.mxu0
      %v548 = vadd.f32 %v499, %v547
      %v549 = vpop.f32.mrf.mxu0
      %v550 = vadd.f32 %v501, %v549
      %551 = vmatmul.bf16.gmra.mxu0 %v355
      %v552 = vpop.f32.mrf.mxu0
      %v553 = vadd.f32 %v504, %v552
      %v554 = vpop.f32.mrf.mxu0
      %v555 = vadd.f32 %v506, %v554
      %556 = vmatmul.bf16.gmra.mxu0 %v357
      %v557 = vpop.f32.mrf.mxu0
      %v558 = vadd.f32 %v509, %v557
      %v559 = vpop.f32.mrf.mxu0
      %v560 = vadd.f32 %v511, %v559
      %561 = vmatmul.bf16.gmra.mxu0 %v359
      %v562 = vpop.f32.mrf.mxu0
      %v563 = vadd.f32 %v514, %v562
      %v564 = vpop.f32.mrf.mxu0
      %v565 = vadd.f32 %v516, %v564
      %566 = vmatmul.bf16.gmra.mxu0 %v361
      %v567 = vpop.f32.mrf.mxu0
      %v568 = vadd.f32 %v519, %v567
      %v569 = vpop.f32.mrf.mxu0
      %v570 = vadd.f32 %v521, %v569
      %571 = vdwg.mxu0
      %v572 = vadd.f32 %v266, %v533
      %v573 = vadd.f32 %v267, %v535
      %v574 = vadd.f32 %v268, %v538
      %v575 = vadd.f32 %v269, %v540
      %v576 = vadd.f32 %v270, %v543
      %v577 = vadd.f32 %v271, %v545
      %v578 = vadd.f32 %v272, %v548
      %v579 = vadd.f32 %v273, %v550
      %v580 = vadd.f32 %v274, %v553
      %v581 = vadd.f32 %v275, %v555
      %v582 = vadd.f32 %v276, %v558
      %v583 = vadd.f32 %v277, %v560
      %v584 = vadd.f32 %v278, %v563
      %v585 = vadd.f32 %v279, %v565
      %v586 = vadd.f32 %v280, %v568
      %v587 = vadd.f32 %v281, %v570
      %588 = vst [vmem:[#allocation2] sm:$0xff] %v572
      %589 = vst [vmem:[#allocation2 + $0x8] sm:$0xff] %v573
      %590 = vst [vmem:[#allocation2 + $0x10] sm:$0xff] %v574
      %591 = vst [vmem:[#allocation2 + $0x18] sm:$0xff] %v575
      %592 = vst [vmem:[#allocation2 + $0x20] sm:$0xff] %v576
      %593 = vst [vmem:[#allocation2 + $0x28] sm:$0xff] %v577
      %594 = vst [vmem:[#allocation2 + $0x30] sm:$0xff] %v578
      %595 = vst [vmem:[#allocation2 + $0x38] sm:$0xff] %v579
      %596 = vst [vmem:[#allocation2 + $0x40] sm:$0xff] %v580
      %597 = vst [vmem:[#allocation2 + $0x48] sm:$0xff] %v581
      %598 = vst [vmem:[#allocation2 + $0x50] sm:$0xff] %v582
      %599 = vst [vmem:[#allocation2 + $0x58] sm:$0xff] %v583
      %600 = vst [vmem:[#allocation2 + $0x60] sm:$0xff] %v584
      %601 = vst [vmem:[#allocation2 + $0x68] sm:$0xff] %v585
      %602 = vst [vmem:[#allocation2 + $0x70] sm:$0xff] %v586
      %603 = vst [vmem:[#allocation2 + $0x78] sm:$0xff] %v587
      // Predicated region
      $region37: #{gnn_forward.2} parent=31 // pred_check
        %p604 = pneg %p205
      $region38: #{gnn_forward.2} parent=31 // pred_check_branch
        %606 = sbr.rel (%p604) target = $region40
      $region39: #{gnn_forward.2} parent=31 // pred_region
        %v607 = vld [vmem:[#allocation2] sm:$0xff]
        %v608 = vld [vmem:[#allocation2 + $0x8] sm:$0xff]
        %v609 = vld [vmem:[#allocation2 + $0x10] sm:$0xff]
        %v610 = vld [vmem:[#allocation2 + $0x18] sm:$0xff]
        %v611 = vld [vmem:[#allocation2 + $0x20] sm:$0xff]
        %v612 = vld [vmem:[#allocation2 + $0x28] sm:$0xff]
        %v613 = vld [vmem:[#allocation2 + $0x30] sm:$0xff]
        %v614 = vld [vmem:[#allocation2 + $0x38] sm:$0xff]
        %v615 = vld [vmem:[#allocation2 + $0x40] sm:$0xff]
        %v616 = vld [vmem:[#allocation2 + $0x48] sm:$0xff]
        %v617 = vld [vmem:[#allocation2 + $0x50] sm:$0xff]
        %v618 = vld [vmem:[#allocation2 + $0x58] sm:$0xff]
        %v619 = vld [vmem:[#allocation2 + $0x60] sm:$0xff]
        %v620 = vld [vmem:[#allocation2 + $0x68] sm:$0xff]
        %v621 = vld [vmem:[#allocation2 + $0x70] sm:$0xff]
        %v622 = vld [vmem:[#allocation2 + $0x78] sm:$0xff]
        %v623 = vmax.f32 %v607, 0.0
        %v624 = vmax.f32 %v608, 0.0
        %v625 = vmax.f32 %v609, 0.0
        %v626 = vmax.f32 %v610, 0.0
        %v627 = vmax.f32 %v611, 0.0
        %v628 = vmax.f32 %v612, 0.0
        %v629 = vmax.f32 %v613, 0.0
        %v630 = vmax.f32 %v614, 0.0
        %v631 = vmax.f32 %v615, 0.0
        %v632 = vmax.f32 %v616, 0.0
        %v633 = vmax.f32 %v617, 0.0
        %v634 = vmax.f32 %v618, 0.0
        %v635 = vmax.f32 %v619, 0.0
        %v636 = vmax.f32 %v620, 0.0
        %v637 = vmax.f32 %v621, 0.0
        %v638 = vmax.f32 %v622, 0.0
        %v639 = vpack.c.bf16 %v623, %v623
        %v640 = vpack.c.bf16 %v624, %v624
        %v641 = vpack.c.bf16 %v625, %v625
        %v642 = vpack.c.bf16 %v626, %v626
        %v643 = vpack.c.bf16 %v627, %v627
        %v644 = vpack.c.bf16 %v628, %v628
        %v645 = vpack.c.bf16 %v629, %v629
        %v646 = vpack.c.bf16 %v630, %v630
        %v647 = vpack.c.bf16 %v631, %v631
        %v648 = vpack.c.bf16 %v632, %v632
        %v649 = vpack.c.bf16 %v633, %v633
        %v650 = vpack.c.bf16 %v634, %v634
        %v651 = vpack.c.bf16 %v635, %v635
        %v652 = vpack.c.bf16 %v636, %v636
        %v653 = vpack.c.bf16 %v637, %v637
        %v654 = vpack.c.bf16 %v638, %v638
        %655 = vst [vmem:[%s203] sm:$0xf] %v639
        %656 = vst [vmem:[%s203 + $0x4] sm:$0xf] %v640
        %657 = vst [vmem:[%s203 + $0x8] sm:$0xf] %v641
        %658 = vst [vmem:[%s203 + $0xc] sm:$0xf] %v642
        %659 = vst [vmem:[%s203 + $0x10] sm:$0xf] %v643
        %660 = vst [vmem:[%s203 + $0x14] sm:$0xf] %v644
        %661 = vst [vmem:[%s203 + $0x18] sm:$0xf] %v645
        %662 = vst [vmem:[%s203 + $0x1c] sm:$0xf] %v646
        %663 = vst [vmem:[%s203 + $0x20] sm:$0xf] %v647
        %664 = vst [vmem:[%s203 + $0x24] sm:$0xf] %v648
        %665 = vst [vmem:[%s203 + $0x28] sm:$0xf] %v649
        %666 = vst [vmem:[%s203 + $0x2c] sm:$0xf] %v650
        %667 = vst [vmem:[%s203 + $0x30] sm:$0xf] %v651
        %668 = vst [vmem:[%s203 + $0x34] sm:$0xf] %v652
        %669 = vst [vmem:[%s203 + $0x38] sm:$0xf] %v653
        %670 = vst [vmem:[%s203 + $0x3c] sm:$0xf] %v654
      $region40: #{gnn_forward.2} parent=31 // pred_fallthru
        _
      %s671 = smul.u32 16, %s18
      %p672 = scmp.lt.s32.totalorder %s671, 31
      %s673 = scalar_select %p672, %s671, 31
      %s674 = smul.addr %s673, 4
      %s675 = scalar_lea.vmem %s3, %s674
      // Predicated region
      $region41: #{gnn_forward.2} parent=31 // pred_check
        %p676 = pneg %p114
      $region42: #{gnn_forward.2} parent=31 // pred_check_branch
        %678 = sbr.rel (%p676) target = $region44
      $region43: #{gnn_forward.2} parent=31 // pred_region
        %s679 = smul.u32 16, %s18
      $region44: #{gnn_forward.2} parent=31 // pred_fallthru
        _
    $region32: #{gnn_forward.2} parent=5 // pred_fallthru
      _
    %p680 = scmp.le.s32.totalorder 2, %s9
    // Predicated region
    $region45: #{gnn_forward.2} parent=5 // pred_check
      %p681 = pneg %p680
    $region46: #{gnn_forward.2} parent=5 // pred_check_branch
      %683 = sbr.rel (%p681) target = $region48
    $region47: #{gnn_forward.2} parent=5 // pred_region
      %s684 = ssub.s32 %s9, 2
      // Predicated region
      $region49: #{gnn_forward.2} parent=47 // pred_check
        %p685 = pneg %p120
      $region50: #{gnn_forward.2} parent=47 // pred_check_branch
        %687 = sbr.rel (%p685) target = $region52
      $region51: #{gnn_forward.2} parent=47 // pred_region
        %s688 = smul.u32 16, %s20
        %p689 = scmp.lt.s32.totalorder %s688, 31
        %s690 = scalar_select %p689, %s688, 31
        %s691 = smul.addr %s690, 4
        %s692 = scalar_lea.vmem %s3, %s691
      $region52: #{gnn_forward.2} parent=47 // pred_fallthru
        _
    $region48: #{gnn_forward.2} parent=5 // pred_fallthru
      _
  $region6: #{gnn_forward.2} parent=0 // loop_footer
    %s13 = sadd.s32 1, %s9
  $region7: #{gnn_forward.2} parent=0 // loop_footer_branch
    %8 = sbr.rel target = $region3
  $region8: #{gnn_forward.2} parent=0 // loop_exit
    _

// kernel: gnn_forward.3
$region0: #{gnn_forward.3}
  #allocation0 [shape = 'u32[]', space=smem, size = 0x4, offset = 0x4, fixed_abs, tag = 'smem constant byte address 0x4 - core index']
  #allocation1 [shape = 'u32[72,128]{1,0:T(1,128)}', space=vmem, size = 0x9000, scoped, tag = 'internal scratch']
  %s0 = inlined_call_operand.vmem [shape: bf16[256,256], index: 0, kind: input, shape index: {}]
  %s1 = inlined_call_operand.vmem [shape: bf16[256,128], index: 1, kind: input, shape index: {}]
  %s2 = inlined_call_operand.vmem [shape: f32[1,128], index: 2, kind: input, shape index: {}]
  %s3 = inlined_call_operand.vmem [shape: f32[256,128], index: 3, kind: output, shape index: {}]
  %s4 = sld [smem:[#allocation0]]
  $region53: #{gnn_forward.3} parent=0
    _
  %s6 = ssub.s32 1, %s4
  %s7 = scalar_select 0, %s6, %s4
  loop: start=0, step=1, limit=4
  $region2: #{gnn_forward.3} parent=0 // loop_pre_header
    _
  $region3: #{gnn_forward.3} parent=0 // loop_header
    %s9 = sphi 0, %s13
    %p10 = scmp.ge.s32.totalorder %s9, 4
    %s16 = sphi 0, %s28
    %s17 = sphi 0, %s24
    %s18 = sphi 0, %s16
    %s19 = sphi 0, %s17
    %s20 = sphi 0, %s18
    %s21 = sphi 0, %s19
    %s33 = sphi 0, %s35
    %s36 = sphi 0, %s33
    %s37 = sphi 0, %s36
    %s53 = sphi 0, %s37
    %s57 = sphi 0, %s57
    %s59 = sphi 0, %s57
    %s60 = sphi 0, %s59
    %s74 = sphi 0, %s60
    %s78 = sphi 0, %s78
    %s80 = sphi 0, %s78
    %s81 = sphi 0, %s80
    %s95 = sphi 0, %s81
    %s101 = sphi 0, %s103
    %s104 = sphi 0, %s101
    %s105 = sphi 0, %s104
    %s121 = sphi 0, %s105
  $region4: #{gnn_forward.3} parent=0 // loop_header_branch
    %12 = sbr.rel (%p10) target = $region8
  $region5: #{gnn_forward.3} parent=0 // loop_body
    %s14 = ssub.s32 %s9, 1
    %s15 = ssub.s32 %s9, 2
    %s22 = sadd.s32 1, %s17
    %p23 = scmp.ge.s32.totalorder %s22, 1
    %s24 = scalar_select %p23, 0, %s22
    %s25 = sadd.s32 1, %s16
    %s26 = scalar_select %p23, %s25, %s16
    %p27 = scmp.ge.s32.totalorder %s26, 2
    %s28 = scalar_select %p27, 0, %s26
    %s29 = ssub.s32 %s16, %s28
    %s30 = ssub.s32 %s17, %s24
    %s31 = sor.u32 %s29, %s30
    %p32 = scmp.eq.s32.totalorder %s31, 0
    %s34 = sadd.s32 %s33, 1
    %s35 = scalar_select %p32, %s33, %s34
    %p38 = pneg %p32
    %p39 = scmp.eq.s32.totalorder %s9, 1
    %p40 = por %p38, %p39
    %p41 = scmp.ne.s32.totalorder %s33, %s36
    %p42 = scmp.eq.s32.totalorder %s9, 0
    %p43 = por %p41, %p42
    %p44 = scmp.ne.s32.totalorder %s33, %s36
    %p45 = scmp.eq.s32.totalorder %s14, 1
    %p46 = por %p44, %p45
    %p47 = scmp.ne.s32.totalorder %s36, %s37
    %p48 = scmp.eq.s32.totalorder %s14, 0
    %p49 = por %p47, %p48
    %p50 = scmp.ne.s32.totalorder %s36, %s37
    %p51 = scmp.eq.s32.totalorder %s15, 1
    %p52 = por %p50, %p51
    %p54 = scmp.ne.s32.totalorder %s37, %s53
    %p55 = scmp.eq.s32.totalorder %s15, 0
    %p56 = por %p54, %p55
    %s58 = sadd.s32 %s57, 1
    %p61 = scmp.eq.s32.totalorder %s9, 1
    %p62 = scmp.ne.s32.totalorder %s57, %s59
    %p63 = scmp.eq.s32.totalorder %s9, 0
    %p64 = por %p62, %p63
    %p65 = scmp.ne.s32.totalorder %s57, %s59
    %p66 = scmp.eq.s32.totalorder %s14, 1
    %p67 = por %p65, %p66
    %p68 = scmp.ne.s32.totalorder %s59, %s60
    %p69 = scmp.eq.s32.totalorder %s14, 0
    %p70 = por %p68, %p69
    %p71 = scmp.ne.s32.totalorder %s59, %s60
    %p72 = scmp.eq.s32.totalorder %s15, 1
    %p73 = por %p71, %p72
    %p75 = scmp.ne.s32.totalorder %s60, %s74
    %p76 = scmp.eq.s32.totalorder %s15, 0
    %p77 = por %p75, %p76
    %s79 = sadd.s32 %s78, 1
    %p82 = scmp.eq.s32.totalorder %s9, 1
    %p83 = scmp.ne.s32.totalorder %s78, %s80
    %p84 = scmp.eq.s32.totalorder %s9, 0
    %p85 = por %p83, %p84
    %p86 = scmp.ne.s32.totalorder %s78, %s80
    %p87 = scmp.eq.s32.totalorder %s14, 1
    %p88 = por %p86, %p87
    %p89 = scmp.ne.s32.totalorder %s80, %s81
    %p90 = scmp.eq.s32.totalorder %s14, 0
    %p91 = por %p89, %p90
    %p92 = scmp.ne.s32.totalorder %s80, %s81
    %p93 = scmp.eq.s32.totalorder %s15, 1
    %p94 = por %p92, %p93
    %p96 = scmp.ne.s32.totalorder %s81, %s95
    %p97 = scmp.eq.s32.totalorder %s15, 0
    %p98 = por %p96, %p97
    %s99 = ssub.s32 %s16, %s28
    %p100 = scmp.eq.s32.totalorder %s99, 0
    %s102 = sadd.s32 %s101, 1
    %s103 = scalar_select %p100, %s101, %s102
    %p106 = pneg %p100
    %p107 = scmp.eq.s32.totalorder %s9, 1
    %p108 = por %p106, %p107
    %p109 = scmp.ne.s32.totalorder %s101, %s104
    %p110 = scmp.eq.s32.totalorder %s9, 0
    %p111 = por %p109, %p110
    %p112 = scmp.ne.s32.totalorder %s101, %s104
    %p113 = scmp.eq.s32.totalorder %s14, 1
    %p114 = por %p112, %p113
    %p115 = scmp.ne.s32.totalorder %s104, %s105
    %p116 = scmp.eq.s32.totalorder %s14, 0
    %p117 = por %p115, %p116
    %p118 = scmp.ne.s32.totalorder %s104, %s105
    %p119 = scmp.eq.s32.totalorder %s15, 1
    %p120 = por %p118, %p119
    %p122 = scmp.ne.s32.totalorder %s105, %s121
    %p123 = scmp.eq.s32.totalorder %s15, 0
    %p124 = por %p122, %p123
    %p125 = scmp.le.s32.totalorder 1, %s9
    %p126 = scmp.lt.s32.totalorder %s9, 3
    %p127 = pnand %p125, %p126
    %p128 = pneg %p127
    // Predicated region
    $region9: #{gnn_forward.3} parent=5 // pred_check
      _
    $region10: #{gnn_forward.3} parent=5 // pred_check_branch
      %130 = sbr.rel (%p127) target = $region12
    $region11: #{gnn_forward.3} parent=5 // pred_region
      %s131 = ssub.s32 %s9, 1
      // Predicated region
      $region13: #{gnn_forward.3} parent=11 // pred_check
        %p132 = pneg %p70
      $region14: #{gnn_forward.3} parent=11 // pred_check_branch
        %134 = sbr.rel (%p132) target = $region16
      $region15: #{gnn_forward.3} parent=11 // pred_region
        _
      $region16: #{gnn_forward.3} parent=11 // pred_fallthru
        _
      // Predicated region
      $region17: #{gnn_forward.3} parent=11 // pred_check
        %p135 = pneg %p91
      $region18: #{gnn_forward.3} parent=11 // pred_check_branch
        %137 = sbr.rel (%p135) target = $region20
      $region19: #{gnn_forward.3} parent=11 // pred_region
        _
      $region20: #{gnn_forward.3} parent=11 // pred_fallthru
        _
    $region12: #{gnn_forward.3} parent=5 // pred_fallthru
      _
    %p138 = scmp.lt.s32.totalorder %s9, 2
    // Predicated region
    $region21: #{gnn_forward.3} parent=5 // pred_check
      %p139 = pneg %p138
    $region22: #{gnn_forward.3} parent=5 // pred_check_branch
      %141 = sbr.rel (%p139) target = $region24
    $region23: #{gnn_forward.3} parent=5 // pred_region
      // Predicated region
      $region25: #{gnn_forward.3} parent=23 // pred_check
        %p142 = pneg %p43
      $region26: #{gnn_forward.3} parent=23 // pred_check_branch
        %144 = sbr.rel (%p142) target = $region28
      $region27: #{gnn_forward.3} parent=23 // pred_region
        %s145 = smul.u32 16, %s16
        %s146 = smul.u32 2, %s17
        %p147 = scmp.lt.s32.totalorder %s145, 31
        %s148 = scalar_select %p147, %s145, 31
        %p149 = scmp.lt.s32.totalorder %s146, 1
        %s150 = scalar_select %p149, %s146, 1
        %s151 = smul.addr %s148, 2
        %s152 = sadd.s32 %s150, %s151
        %s153 = smul.addr %s152, 4
        %s154 = scalar_lea.vmem %s0, %s153
        %s155 = smul.u32 16, %s16
        %s156 = smul.u32 2, %s17
      $region28: #{gnn_forward.3} parent=23 // pred_fallthru
        _
    $region24: #{gnn_forward.3} parent=5 // pred_fallthru
      _
    %p157 = scmp.le.s32.totalorder 1, %s9
    %p158 = scmp.lt.s32.totalorder %s9, 3
    %p159 = pnand %p157, %p158
    %p160 = pneg %p159
    // Predicated region
    $region29: #{gnn_forward.3} parent=5 // pred_check
      _
    $region30: #{gnn_forward.3} parent=5 // pred_check_branch
      %162 = sbr.rel (%p159) target = $region32
    $region31: #{gnn_forward.3} parent=5 // pred_region
      %s163 = ssub.s32 %s9, 1
      %s164 = smul.u32 16, %s18
      %s165 = smul.u32 2, %s19
      %p166 = scmp.lt.s32.totalorder %s164, 31
      %s167 = scalar_select %p166, %s164, 31
      %p168 = scmp.lt.s32.totalorder %s165, 1
      %s169 = scalar_select %p168, %s165, 1
      %s170 = smul.addr %s167, 2
      %s171 = sadd.s32 %s169, %s170
      %s172 = smul.addr %s171, 4
      %s173 = scalar_lea.vmem %s0, %s172
      %p174 = pneg %p49
      %p175 = pneg %p46
      %p176 = pneg %p70
      %p177 = pneg %p67
      %p178 = pneg %p91
      %p179 = pneg %p88
      %p180 = pneg %p117
      %p181 = pneg %p114
      %s182 = smul.u32 16, %s18
      %p183 = scmp.lt.s32.totalorder %s182, 31
      %s184 = scalar_select %p183, %s182, 31
      %s185 = smul.addr %s184, 8
      %s186 = scalar_lea.vmem %s3, %s185
      %s187 = smul.u32 16, %s18
      %s188 = smul.u32 2, %s19
      %p189 = scmp.lt.s32.totalorder %s187, 31
      %s190 = scalar_select %p189, %s187, 31
      %p191 = scmp.lt.s32.totalorder %s188, 1
      %s192 = scalar_select %p191, %s188, 1
      %s193 = smul.addr %s190, 2
      %s194 = sadd.s32 %s192, %s193
      %s195 = smul.addr %s194, 4
      %s196 = scalar_lea.vmem %s0, %s195
      %s197 = smul.u32 16, %s18
      %s198 = smul.u32 2, %s19
      %s199 = smul.u32 16, %s18
      %p200 = scmp.lt.s32.totalorder %s199, 31
      %s201 = scalar_select %p200, %s199, 31
      %s202 = smul.addr %s201, 8
      %s203 = scalar_lea.vmem %s3, %s202
      %s204 = smul.u32 16, %s18
      %p205 = scmp.eq.s32.totalorder %s19, 0
      // Predicated region
      $region33: #{gnn_forward.3} parent=31 // pred_check
        %p206 = pneg %p205
      $region34: #{gnn_forward.3} parent=31 // pred_check_branch
        %208 = sbr.rel (%p206) target = $region36
      $region35: #{gnn_forward.3} parent=31 // pred_region
        %v209 = vld [vmem:[%s2] sm:$0x1]
        %v211 = vperm.slane %v209, 0
        %213 = vst [vmem:[%s203] sm:$0xff] %v211
        %214 = vst [vmem:[%s203 + $0x8] sm:$0xff] %v211
        %215 = vst [vmem:[%s203 + $0x10] sm:$0xff] %v211
        %216 = vst [vmem:[%s203 + $0x18] sm:$0xff] %v211
        %217 = vst [vmem:[%s203 + $0x20] sm:$0xff] %v211
        %218 = vst [vmem:[%s203 + $0x28] sm:$0xff] %v211
        %219 = vst [vmem:[%s203 + $0x30] sm:$0xff] %v211
        %220 = vst [vmem:[%s203 + $0x38] sm:$0xff] %v211
        %221 = vst [vmem:[%s203 + $0x40] sm:$0xff] %v211
        %222 = vst [vmem:[%s203 + $0x48] sm:$0xff] %v211
        %223 = vst [vmem:[%s203 + $0x50] sm:$0xff] %v211
        %224 = vst [vmem:[%s203 + $0x58] sm:$0xff] %v211
        %225 = vst [vmem:[%s203 + $0x60] sm:$0xff] %v211
        %226 = vst [vmem:[%s203 + $0x68] sm:$0xff] %v211
        %227 = vst [vmem:[%s203 + $0x70] sm:$0xff] %v211
        %228 = vst [vmem:[%s203 + $0x78] sm:$0xff] %v211
      $region36: #{gnn_forward.3} parent=31 // pred_fallthru
        _
      %s229 = smul.u32 %s19, 256
      %s230 = sshra.s32 %s229, 3
      %s231 = sand.u32 %s229, 7
      %s232 = smul.addr %s230, 4
      %s233 = scalar_lea.vmem %s1, %s232
      %v234 = vld [vmem:[%s233] sm:$0xf]
      %v235 = vld [vmem:[%s233 + $0x4] sm:$0xf]
      %v236 = vld [vmem:[%s233 + $0x8] sm:$0xf]
      %v237 = vld [vmem:[%s233 + $0xc] sm:$0xf]
      %v238 = vld [vmem:[%s233 + $0x10] sm:$0xf]
      %v239 = vld [vmem:[%s233 + $0x14] sm:$0xf]
      %v240 = vld [vmem:[%s233 + $0x18] sm:$0xf]
      %v241 = vld [vmem:[%s233 + $0x1c] sm:$0xf]
      %v242 = vld [vmem:[%s233 + $0x20] sm:$0xf]
      %v243 = vld [vmem:[%s233 + $0x24] sm:$0xf]
      %v244 = vld [vmem:[%s233 + $0x28] sm:$0xf]
      %v245 = vld [vmem:[%s233 + $0x2c] sm:$0xf]
      %v246 = vld [vmem:[%s233 + $0x30] sm:$0xf]
      %v247 = vld [vmem:[%s233 + $0x34] sm:$0xf]
      %v248 = vld [vmem:[%s233 + $0x38] sm:$0xf]
      %v249 = vld [vmem:[%s233 + $0x3c] sm:$0xf]
      %v250 = vld [vmem:[%s233 + $0x40] sm:$0xf]
      %v251 = vld [vmem:[%s233 + $0x44] sm:$0xf]
      %v252 = vld [vmem:[%s233 + $0x48] sm:$0xf]
      %v253 = vld [vmem:[%s233 + $0x4c] sm:$0xf]
      %v254 = vld [vmem:[%s233 + $0x50] sm:$0xf]
      %v255 = vld [vmem:[%s233 + $0x54] sm:$0xf]
      %v256 = vld [vmem:[%s233 + $0x58] sm:$0xf]
      %v257 = vld [vmem:[%s233 + $0x5c] sm:$0xf]
      %v258 = vld [vmem:[%s233 + $0x60] sm:$0xf]
      %v259 = vld [vmem:[%s233 + $0x64] sm:$0xf]
      %v260 = vld [vmem:[%s233 + $0x68] sm:$0xf]
      %v261 = vld [vmem:[%s233 + $0x6c] sm:$0xf]
      %v262 = vld [vmem:[%s233 + $0x70] sm:$0xf]
      %v263 = vld [vmem:[%s233 + $0x74] sm:$0xf]
      %v264 = vld [vmem:[%s233 + $0x78] sm:$0xf]
      %v265 = vld [vmem:[%s233 + $0x7c] sm:$0xf]
      %v266 = vld [vmem:[%s203] sm:$0xff]
      %v267 = vld [vmem:[%s203 + $0x8] sm:$0xff]
      %v268 = vld [vmem:[%s203 + $0x10] sm:$0xff]
      %v269 = vld [vmem:[%s203 + $0x18] sm:$0xff]
      %v270 = vld [vmem:[%s203 + $0x20] sm:$0xff]
      %v271 = vld [vmem:[%s203 + $0x28] sm:$0xff]
      %v272 = vld [vmem:[%s203 + $0x30] sm:$0xff]
      %v273 = vld [vmem:[%s203 + $0x38] sm:$0xff]
      %v274 = vld [vmem:[%s203 + $0x40] sm:$0xff]
      %v275 = vld [vmem:[%s203 + $0x48] sm:$0xff]
      %v276 = vld [vmem:[%s203 + $0x50] sm:$0xff]
      %v277 = vld [vmem:[%s203 + $0x58] sm:$0xff]
      %v278 = vld [vmem:[%s203 + $0x60] sm:$0xff]
      %v279 = vld [vmem:[%s203 + $0x68] sm:$0xff]
      %v280 = vld [vmem:[%s203 + $0x70] sm:$0xff]
      %v281 = vld [vmem:[%s203 + $0x78] sm:$0xff]
      %v282 = vld [vmem:[%s196] sm:$0xff]
      %v283 = vld [vmem:[%s196 + $0x8] sm:$0xff]
      %v284 = vld [vmem:[%s196 + $0x10] sm:$0xff]
      %v285 = vld [vmem:[%s196 + $0x18] sm:$0xff]
      %v286 = vld [vmem:[%s196 + $0x20] sm:$0xff]
      %v287 = vld [vmem:[%s196 + $0x28] sm:$0xff]
      %v288 = vld [vmem:[%s196 + $0x30] sm:$0xff]
      %v289 = vld [vmem:[%s196 + $0x38] sm:$0xff]
      %v290 = vld [vmem:[%s196 + $0x40] sm:$0xff]
      %v291 = vld [vmem:[%s196 + $0x48] sm:$0xff]
      %v292 = vld [vmem:[%s196 + $0x50] sm:$0xff]
      %v293 = vld [vmem:[%s196 + $0x58] sm:$0xff]
      %v294 = vld [vmem:[%s196 + $0x60] sm:$0xff]
      %v295 = vld [vmem:[%s196 + $0x68] sm:$0xff]
      %v296 = vld [vmem:[%s196 + $0x70] sm:$0xff]
      %v297 = vld [vmem:[%s196 + $0x78] sm:$0xff]
      %v314 = vunpack.c.l.b16 %v282
      %v315 = vunpack.c.h.b16 %v282
      %v316 = vunpack.c.l.b16 %v283
      %v317 = vunpack.c.h.b16 %v283
      %v318 = vunpack.c.l.b16 %v284
      %v319 = vunpack.c.h.b16 %v284
      %v320 = vunpack.c.l.b16 %v285
      %v321 = vunpack.c.h.b16 %v285
      %v322 = vunpack.c.l.b16 %v286
      %v323 = vunpack.c.h.b16 %v286
      %v324 = vunpack.c.l.b16 %v287
      %v325 = vunpack.c.h.b16 %v287
      %v326 = vunpack.c.l.b16 %v288
      %v327 = vunpack.c.h.b16 %v288
      %v328 = vunpack.c.l.b16 %v289
      %v329 = vunpack.c.h.b16 %v289
      %v330 = vunpack.c.l.b16 %v290
      %v331 = vunpack.c.h.b16 %v290
      %v332 = vunpack.c.l.b16 %v291
      %v333 = vunpack.c.h.b16 %v291
      %v334 = vunpack.c.l.b16 %v292
      %v335 = vunpack.c.h.b16 %v292
      %v336 = vunpack.c.l.b16 %v293
      %v337 = vunpack.c.h.b16 %v293
      %v338 = vunpack.c.l.b16 %v294
      %v339 = vunpack.c.h.b16 %v294
      %v340 = vunpack.c.l.b16 %v295
      %v341 = vunpack.c.h.b16 %v295
      %v342 = vunpack.c.l.b16 %v296
      %v343 = vunpack.c.h.b16 %v296
      %v344 = vunpack.c.l.b16 %v297
      %v345 = vunpack.c.h.b16 %v297
      %v346 = vpack.c.b16 %v316, %v314
      %v347 = vpack.c.b16 %v317, %v315
      %v348 = vpack.c.b16 %v320, %v318
      %v349 = vpack.c.b16 %v321, %v319
      %v350 = vpack.c.b16 %v324, %v322
      %v351 = vpack.c.b16 %v325, %v323
      %v352 = vpack.c.b16 %v328, %v326
      %v353 = vpack.c.b16 %v329, %v327
      %v354 = vpack.c.b16 %v332, %v330
      %v355 = vpack.c.b16 %v333, %v331
      %v356 = vpack.c.b16 %v336, %v334
      %v357 = vpack.c.b16 %v337, %v335
      %v358 = vpack.c.b16 %v340, %v338
      %v359 = vpack.c.b16 %v341, %v339
      %v360 = vpack.c.b16 %v344, %v342
      %v361 = vpack.c.b16 %v345, %v343
      %v410 = vunpack.c.l.b16 %v234
      %v411 = vunpack.c.l.b16 %v235
      %v412 = vunpack.c.l.b16 %v236
      %v413 = vunpack.c.l.b16 %v237
      %v414 = vunpack.c.l.b16 %v238
      %v415 = vunpack.c.l.b16 %v239
      %v416 = vunpack.c.l.b16 %v240
      %v417 = vunpack.c.l.b16 %v241
      %v418 = vunpack.c.l.b16 %v242
      %v419 = vunpack.c.l.b16 %v243
      %v420 = vunpack.c.l.b16 %v244
      %v421 = vunpack.c.l.b16 %v245
      %v422 = vunpack.c.l.b16 %v246
      %v423 = vunpack.c.l.b16 %v247
      %v424 = vunpack.c.l.b16 %v248
      %v425 = vunpack.c.l.b16 %v249
      %v426 = vunpack.c.l.b16 %v250
      %v427 = vunpack.c.l.b16 %v251
      %v428 = vunpack.c.l.b16 %v252
      %v429 = vunpack.c.l.b16 %v253
      %v430 = vunpack.c.l.b16 %v254
      %v431 = vunpack.c.l.b16 %v255
      %v432 = vunpack.c.l.b16 %v256
      %v433 = vunpack.c.l.b16 %v257
      %v434 = vunpack.c.l.b16 %v258
      %v435 = vunpack.c.l.b16 %v259
      %v436 = vunpack.c.l.b16 %v260
      %v437 = vunpack.c.l.b16 %v261
      %v438 = vunpack.c.l.b16 %v262
      %v439 = vunpack.c.l.b16 %v263
      %v440 = vunpack.c.l.b16 %v264
      %v441 = vunpack.c.l.b16 %v265
      %v442 = vpack.c.b16 %v411, %v410
      %v443 = vpack.c.b16 %v413, %v412
      %v444 = vpack.c.b16 %v415, %v414
      %v445 = vpack.c.b16 %v417, %v416
      %v446 = vpack.c.b16 %v419, %v418
      %v447 = vpack.c.b16 %v421, %v420
      %v448 = vpack.c.b16 %v423, %v422
      %v449 = vpack.c.b16 %v425, %v424
      %v450 = vpack.c.b16 %v427, %v426
      %v451 = vpack.c.b16 %v429, %v428
      %v452 = vpack.c.b16 %v431, %v430
      %v453 = vpack.c.b16 %v433, %v432
      %v454 = vpack.c.b16 %v435, %v434
      %v455 = vpack.c.b16 %v437, %v436
      %v456 = vpack.c.b16 %v439, %v438
      %v457 = vpack.c.b16 %v441, %v440
      %474 = vmatpush.bf16.msra.mxu0 %v449
      %475 = vmatpush.bf16.msra.mxu0 %v448
      %476 = vmatpush.bf16.msra.mxu0 %v447
      %477 = vmatpush.bf16.msra.mxu0 %v446
      %478 = vmatpush.bf16.msra.mxu0 %v445
      %479 = vmatpush.bf16.msra.mxu0 %v444
      %480 = vmatpush.bf16.msra.mxu0 %v443
      %481 = vmatpush.bf16.msra.mxu0 %v442
      %482 = vmatmul.bf16.gmra.mxu0 %v346
      %v483 = vpop.f32.mrf.mxu0
      %v484 = vadd.f32 0.0, %v483
      %v485 = vpop.f32.mrf.mxu0
      %v486 = vadd.f32 0.0, %v485
      %487 = vmatmul.bf16.gmra.mxu0 %v348
      %v488 = vpop.f32.mrf.mxu0
      %v489 = vadd.f32 0.0, %v488
      %v490 = vpop.f32.mrf.mxu0
      %v491 = vadd.f32 0.0, %v490
      %492 = vmatmul.bf16.gmra.mxu0 %v350
      %v493 = vpop.f32.mrf.mxu0
      %v494 = vadd.f32 0.0, %v493
      %v495 = vpop.f32.mrf.mxu0
      %v496 = vadd.f32 0.0, %v495
      %497 = vmatmul.bf16.gmra.mxu0 %v352
      %v498 = vpop.f32.mrf.mxu0
      %v499 = vadd.f32 0.0, %v498
      %v500 = vpop.f32.mrf.mxu0
      %v501 = vadd.f32 0.0, %v500
      %502 = vmatmul.bf16.gmra.mxu0 %v354
      %v503 = vpop.f32.mrf.mxu0
      %v504 = vadd.f32 0.0, %v503
      %v505 = vpop.f32.mrf.mxu0
      %v506 = vadd.f32 0.0, %v505
      %507 = vmatmul.bf16.gmra.mxu0 %v356
      %v508 = vpop.f32.mrf.mxu0
      %v509 = vadd.f32 0.0, %v508
      %v510 = vpop.f32.mrf.mxu0
      %v511 = vadd.f32 0.0, %v510
      %512 = vmatmul.bf16.gmra.mxu0 %v358
      %v513 = vpop.f32.mrf.mxu0
      %v514 = vadd.f32 0.0, %v513
      %v515 = vpop.f32.mrf.mxu0
      %v516 = vadd.f32 0.0, %v515
      %517 = vmatmul.bf16.gmra.mxu0 %v360
      %v518 = vpop.f32.mrf.mxu0
      %v519 = vadd.f32 0.0, %v518
      %v520 = vpop.f32.mrf.mxu0
      %v521 = vadd.f32 0.0, %v520
      %522 = vdwg.mxu0
      %523 = vmatpush.bf16.msra.mxu0 %v457
      %524 = vmatpush.bf16.msra.mxu0 %v456
      %525 = vmatpush.bf16.msra.mxu0 %v455
      %526 = vmatpush.bf16.msra.mxu0 %v454
      %527 = vmatpush.bf16.msra.mxu0 %v453
      %528 = vmatpush.bf16.msra.mxu0 %v452
      %529 = vmatpush.bf16.msra.mxu0 %v451
      %530 = vmatpush.bf16.msra.mxu0 %v450
      %531 = vmatmul.bf16.gmra.mxu0 %v347
      %v532 = vpop.f32.mrf.mxu0
      %v533 = vadd.f32 %v484, %v532
      %v534 = vpop.f32.mrf.mxu0
      %v535 = vadd.f32 %v486, %v534
      %536 = vmatmul.bf16.gmra.mxu0 %v349
      %v537 = vpop.f32.mrf.mxu0
      %v538 = vadd.f32 %v489, %v537
      %v539 = vpop.f32.mrf.mxu0
      %v540 = vadd.f32 %v491, %v539
      %541 = vmatmul.bf16.gmra.mxu0 %v351
      %v542 = vpop.f32.mrf.mxu0
      %v543 = vadd.f32 %v494, %v542
      %v544 = vpop.f32.mrf.mxu0
      %v545 = vadd.f32 %v496, %v544
      %546 = vmatmul.bf16.gmra.mxu0 %v353
      %v547 = vpop.f32.mrf.mxu0
      %v548 = vadd.f32 %v499, %v547
      %v549 = vpop.f32.mrf.mxu0
      %v550 = vadd.f32 %v501, %v549
      %551 = vmatmul.bf16.gmra.mxu0 %v355
      %v552 = vpop.f32.mrf.mxu0
      %v553 = vadd.f32 %v504, %v552
      %v554 = vpop.f32.mrf.mxu0
      %v555 = vadd.f32 %v506, %v554
      %556 = vmatmul.bf16.gmra.mxu0 %v357
      %v557 = vpop.f32.mrf.mxu0
      %v558 = vadd.f32 %v509, %v557
      %v559 = vpop.f32.mrf.mxu0
      %v560 = vadd.f32 %v511, %v559
      %561 = vmatmul.bf16.gmra.mxu0 %v359
      %v562 = vpop.f32.mrf.mxu0
      %v563 = vadd.f32 %v514, %v562
      %v564 = vpop.f32.mrf.mxu0
      %v565 = vadd.f32 %v516, %v564
      %566 = vmatmul.bf16.gmra.mxu0 %v361
      %v567 = vpop.f32.mrf.mxu0
      %v568 = vadd.f32 %v519, %v567
      %v569 = vpop.f32.mrf.mxu0
      %v570 = vadd.f32 %v521, %v569
      %571 = vdwg.mxu0
      %v572 = vadd.f32 %v266, %v533
      %v573 = vadd.f32 %v267, %v535
      %v574 = vadd.f32 %v268, %v538
      %v575 = vadd.f32 %v269, %v540
      %v576 = vadd.f32 %v270, %v543
      %v577 = vadd.f32 %v271, %v545
      %v578 = vadd.f32 %v272, %v548
      %v579 = vadd.f32 %v273, %v550
      %v580 = vadd.f32 %v274, %v553
      %v581 = vadd.f32 %v275, %v555
      %v582 = vadd.f32 %v276, %v558
      %v583 = vadd.f32 %v277, %v560
      %v584 = vadd.f32 %v278, %v563
      %v585 = vadd.f32 %v279, %v565
      %v586 = vadd.f32 %v280, %v568
      %v587 = vadd.f32 %v281, %v570
      %588 = vst [vmem:[%s203] sm:$0xff] %v572
      %589 = vst [vmem:[%s203 + $0x8] sm:$0xff] %v573
      %590 = vst [vmem:[%s203 + $0x10] sm:$0xff] %v574
      %591 = vst [vmem:[%s203 + $0x18] sm:$0xff] %v575
      %592 = vst [vmem:[%s203 + $0x20] sm:$0xff] %v576
      %593 = vst [vmem:[%s203 + $0x28] sm:$0xff] %v577
      %594 = vst [vmem:[%s203 + $0x30] sm:$0xff] %v578
      %595 = vst [vmem:[%s203 + $0x38] sm:$0xff] %v579
      %596 = vst [vmem:[%s203 + $0x40] sm:$0xff] %v580
      %597 = vst [vmem:[%s203 + $0x48] sm:$0xff] %v581
      %598 = vst [vmem:[%s203 + $0x50] sm:$0xff] %v582
      %599 = vst [vmem:[%s203 + $0x58] sm:$0xff] %v583
      %600 = vst [vmem:[%s203 + $0x60] sm:$0xff] %v584
      %601 = vst [vmem:[%s203 + $0x68] sm:$0xff] %v585
      %602 = vst [vmem:[%s203 + $0x70] sm:$0xff] %v586
      %603 = vst [vmem:[%s203 + $0x78] sm:$0xff] %v587
      // Predicated region
      $region37: #{gnn_forward.3} parent=31 // pred_check
        %p604 = pneg %p205
      $region38: #{gnn_forward.3} parent=31 // pred_check_branch
        %606 = sbr.rel (%p604) target = $region40
      $region39: #{gnn_forward.3} parent=31 // pred_region
        %v607 = vld [vmem:[%s203] sm:$0xff]
        %v608 = vld [vmem:[%s203 + $0x8] sm:$0xff]
        %v609 = vld [vmem:[%s203 + $0x10] sm:$0xff]
        %v610 = vld [vmem:[%s203 + $0x18] sm:$0xff]
        %v611 = vld [vmem:[%s203 + $0x20] sm:$0xff]
        %v612 = vld [vmem:[%s203 + $0x28] sm:$0xff]
        %v613 = vld [vmem:[%s203 + $0x30] sm:$0xff]
        %v614 = vld [vmem:[%s203 + $0x38] sm:$0xff]
        %v615 = vld [vmem:[%s203 + $0x40] sm:$0xff]
        %v616 = vld [vmem:[%s203 + $0x48] sm:$0xff]
        %v617 = vld [vmem:[%s203 + $0x50] sm:$0xff]
        %v618 = vld [vmem:[%s203 + $0x58] sm:$0xff]
        %v619 = vld [vmem:[%s203 + $0x60] sm:$0xff]
        %v620 = vld [vmem:[%s203 + $0x68] sm:$0xff]
        %v621 = vld [vmem:[%s203 + $0x70] sm:$0xff]
        %v622 = vld [vmem:[%s203 + $0x78] sm:$0xff]
        %v623 = vlaneseq
        %v624 = vand.u32 %v623, 127
        %vm625 = vcmp.lt.s32.totalorder %v624, 8
        %v626 = vsel %vm625, %v607, -inf
        %v627 = vsel %vm625, %v608, -inf
        %v628 = vsel %vm625, %v609, -inf
        %v629 = vsel %vm625, %v610, -inf
        %v630 = vsel %vm625, %v611, -inf
        %v631 = vsel %vm625, %v612, -inf
        %v632 = vsel %vm625, %v613, -inf
        %v633 = vsel %vm625, %v614, -inf
        %v634 = vsel %vm625, %v615, -inf
        %v635 = vsel %vm625, %v616, -inf
        %v636 = vsel %vm625, %v617, -inf
        %v637 = vsel %vm625, %v618, -inf
        %v638 = vsel %vm625, %v619, -inf
        %v639 = vsel %vm625, %v620, -inf
        %v640 = vsel %vm625, %v621, -inf
        %v641 = vsel %vm625, %v622, -inf
        %642 = vmax.xlane.f32.xlu0 %v626
        %v643 = vpop.xlane.xlu0 %642
        %644 = vmax.xlane.f32.xlu0 %v627
        %v645 = vpop.xlane.xlu0 %644
        %646 = vmax.xlane.f32.xlu0 %v628
        %v647 = vpop.xlane.xlu0 %646
        %648 = vmax.xlane.f32.xlu0 %v629
        %v649 = vpop.xlane.xlu0 %648
        %650 = vmax.xlane.f32.xlu0 %v630
        %v651 = vpop.xlane.xlu0 %650
        %652 = vmax.xlane.f32.xlu0 %v631
        %v653 = vpop.xlane.xlu0 %652
        %654 = vmax.xlane.f32.xlu0 %v632
        %v655 = vpop.xlane.xlu0 %654
        %656 = vmax.xlane.f32.xlu0 %v633
        %v657 = vpop.xlane.xlu0 %656
        %658 = vmax.xlane.f32.xlu0 %v634
        %v659 = vpop.xlane.xlu0 %658
        %660 = vmax.xlane.f32.xlu0 %v635
        %v661 = vpop.xlane.xlu0 %660
        %662 = vmax.xlane.f32.xlu0 %v636
        %v663 = vpop.xlane.xlu0 %662
        %664 = vmax.xlane.f32.xlu0 %v637
        %v665 = vpop.xlane.xlu0 %664
        %666 = vmax.xlane.f32.xlu0 %v638
        %v667 = vpop.xlane.xlu0 %666
        %668 = vmax.xlane.f32.xlu0 %v639
        %v669 = vpop.xlane.xlu0 %668
        %670 = vmax.xlane.f32.xlu0 %v640
        %v671 = vpop.xlane.xlu0 %670
        %672 = vmax.xlane.f32.xlu0 %v641
        %v673 = vpop.xlane.xlu0 %672
        %v674 = vsub.f32 %v607, %v643
        %v675 = vsub.f32 %v608, %v645
        %v676 = vsub.f32 %v609, %v647
        %v677 = vsub.f32 %v610, %v649
        %v678 = vsub.f32 %v611, %v651
        %v679 = vsub.f32 %v612, %v653
        %v680 = vsub.f32 %v613, %v655
        %v681 = vsub.f32 %v614, %v657
        %v682 = vsub.f32 %v615, %v659
        %v683 = vsub.f32 %v616, %v661
        %v684 = vsub.f32 %v617, %v663
        %v685 = vsub.f32 %v618, %v665
        %v686 = vsub.f32 %v619, %v667
        %v687 = vsub.f32 %v620, %v669
        %v688 = vsub.f32 %v621, %v671
        %v689 = vsub.f32 %v622, %v673
        %v690 = vmul.f32 %v674, 1.442695
        %v691 = vpow.pop %v690
        %v692 = vmul.f32 %v675, 1.442695
        %v693 = vpow.pop %v692
        %v694 = vmul.f32 %v676, 1.442695
        %v695 = vpow.pop %v694
        %v696 = vmul.f32 %v677, 1.442695
        %v697 = vpow.pop %v696
        %v698 = vmul.f32 %v678, 1.442695
        %v699 = vpow.pop %v698
        %v700 = vmul.f32 %v679, 1.442695
        %v701 = vpow.pop %v700
        %v702 = vmul.f32 %v680, 1.442695
        %v703 = vpow.pop %v702
        %v704 = vmul.f32 %v681, 1.442695
        %v705 = vpow.pop %v704
        %v706 = vmul.f32 %v682, 1.442695
        %v707 = vpow.pop %v706
        %v708 = vmul.f32 %v683, 1.442695
        %v709 = vpow.pop %v708
        %v710 = vmul.f32 %v684, 1.442695
        %v711 = vpow.pop %v710
        %v712 = vmul.f32 %v685, 1.442695
        %v713 = vpow.pop %v712
        %v714 = vmul.f32 %v686, 1.442695
        %v715 = vpow.pop %v714
        %v716 = vmul.f32 %v687, 1.442695
        %v717 = vpow.pop %v716
        %v718 = vmul.f32 %v688, 1.442695
        %v719 = vpow.pop %v718
        %v720 = vmul.f32 %v689, 1.442695
        %v721 = vpow.pop %v720
        %v722 = vsel %vm625, %v691, 0.0
        %v723 = vsel %vm625, %v693, 0.0
        %v724 = vsel %vm625, %v695, 0.0
        %v725 = vsel %vm625, %v697, 0.0
        %v726 = vsel %vm625, %v699, 0.0
        %v727 = vsel %vm625, %v701, 0.0
        %v728 = vsel %vm625, %v703, 0.0
        %v729 = vsel %vm625, %v705, 0.0
        %v730 = vsel %vm625, %v707, 0.0
        %v731 = vsel %vm625, %v709, 0.0
        %v732 = vsel %vm625, %v711, 0.0
        %v733 = vsel %vm625, %v713, 0.0
        %v734 = vsel %vm625, %v715, 0.0
        %v735 = vsel %vm625, %v717, 0.0
        %v736 = vsel %vm625, %v719, 0.0
        %v737 = vsel %vm625, %v721, 0.0
        %738 = vadd.xlane.f32.xlu0 %v722
        %v739 = vpop.xlane.xlu0 %738
        %740 = vadd.xlane.f32.xlu0 %v723
        %v741 = vpop.xlane.xlu0 %740
        %742 = vadd.xlane.f32.xlu0 %v724
        %v743 = vpop.xlane.xlu0 %742
        %744 = vadd.xlane.f32.xlu0 %v725
        %v745 = vpop.xlane.xlu0 %744
        %746 = vadd.xlane.f32.xlu0 %v726
        %v747 = vpop.xlane.xlu0 %746
        %748 = vadd.xlane.f32.xlu0 %v727
        %v749 = vpop.xlane.xlu0 %748
        %750 = vadd.xlane.f32.xlu0 %v728
        %v751 = vpop.xlane.xlu0 %750
        %752 = vadd.xlane.f32.xlu0 %v729
        %v753 = vpop.xlane.xlu0 %752
        %754 = vadd.xlane.f32.xlu0 %v730
        %v755 = vpop.xlane.xlu0 %754
        %756 = vadd.xlane.f32.xlu0 %v731
        %v757 = vpop.xlane.xlu0 %756
        %758 = vadd.xlane.f32.xlu0 %v732
        %v759 = vpop.xlane.xlu0 %758
        %760 = vadd.xlane.f32.xlu0 %v733
        %v761 = vpop.xlane.xlu0 %760
        %762 = vadd.xlane.f32.xlu0 %v734
        %v763 = vpop.xlane.xlu0 %762
        %764 = vadd.xlane.f32.xlu0 %v735
        %v765 = vpop.xlane.xlu0 %764
        %766 = vadd.xlane.f32.xlu0 %v736
        %v767 = vpop.xlane.xlu0 %766
        %768 = vadd.xlane.f32.xlu0 %v737
        %v769 = vpop.xlane.xlu0 %768
        %v770 = vlog2.pop %v739
        %v771 = vmul.f32 %v770, 0.6931472
        %v772 = vlog2.pop %v741
        %v773 = vmul.f32 %v772, 0.6931472
        %v774 = vlog2.pop %v743
        %v775 = vmul.f32 %v774, 0.6931472
        %v776 = vlog2.pop %v745
        %v777 = vmul.f32 %v776, 0.6931472
        %v778 = vlog2.pop %v747
        %v779 = vmul.f32 %v778, 0.6931472
        %v780 = vlog2.pop %v749
        %v781 = vmul.f32 %v780, 0.6931472
        %v782 = vlog2.pop %v751
        %v783 = vmul.f32 %v782, 0.6931472
        %v784 = vlog2.pop %v753
        %v785 = vmul.f32 %v784, 0.6931472
        %v786 = vlog2.pop %v755
        %v787 = vmul.f32 %v786, 0.6931472
        %v788 = vlog2.pop %v757
        %v789 = vmul.f32 %v788, 0.6931472
        %v790 = vlog2.pop %v759
        %v791 = vmul.f32 %v790, 0.6931472
        %v792 = vlog2.pop %v761
        %v793 = vmul.f32 %v792, 0.6931472
        %v794 = vlog2.pop %v763
        %v795 = vmul.f32 %v794, 0.6931472
        %v796 = vlog2.pop %v765
        %v797 = vmul.f32 %v796, 0.6931472
        %v798 = vlog2.pop %v767
        %v799 = vmul.f32 %v798, 0.6931472
        %v800 = vlog2.pop %v769
        %v801 = vmul.f32 %v800, 0.6931472
        %v802 = vsub.f32 %v674, %v771
        %v803 = vsub.f32 %v675, %v773
        %v804 = vsub.f32 %v676, %v775
        %v805 = vsub.f32 %v677, %v777
        %v806 = vsub.f32 %v678, %v779
        %v807 = vsub.f32 %v679, %v781
        %v808 = vsub.f32 %v680, %v783
        %v809 = vsub.f32 %v681, %v785
        %v810 = vsub.f32 %v682, %v787
        %v811 = vsub.f32 %v683, %v789
        %v812 = vsub.f32 %v684, %v791
        %v813 = vsub.f32 %v685, %v793
        %v814 = vsub.f32 %v686, %v795
        %v815 = vsub.f32 %v687, %v797
        %v816 = vsub.f32 %v688, %v799
        %v817 = vsub.f32 %v689, %v801
        %818 = vst [vmem:[%s203] sm:$0xff] %v802
        %819 = vst [vmem:[%s203 + $0x8] sm:$0xff] %v803
        %820 = vst [vmem:[%s203 + $0x10] sm:$0xff] %v804
        %821 = vst [vmem:[%s203 + $0x18] sm:$0xff] %v805
        %822 = vst [vmem:[%s203 + $0x20] sm:$0xff] %v806
        %823 = vst [vmem:[%s203 + $0x28] sm:$0xff] %v807
        %824 = vst [vmem:[%s203 + $0x30] sm:$0xff] %v808
        %825 = vst [vmem:[%s203 + $0x38] sm:$0xff] %v809
        %826 = vst [vmem:[%s203 + $0x40] sm:$0xff] %v810
        %827 = vst [vmem:[%s203 + $0x48] sm:$0xff] %v811
        %828 = vst [vmem:[%s203 + $0x50] sm:$0xff] %v812
        %829 = vst [vmem:[%s203 + $0x58] sm:$0xff] %v813
        %830 = vst [vmem:[%s203 + $0x60] sm:$0xff] %v814
        %831 = vst [vmem:[%s203 + $0x68] sm:$0xff] %v815
        %832 = vst [vmem:[%s203 + $0x70] sm:$0xff] %v816
        %833 = vst [vmem:[%s203 + $0x78] sm:$0xff] %v817
      $region40: #{gnn_forward.3} parent=31 // pred_fallthru
        _
      %s834 = smul.u32 16, %s18
      %p835 = scmp.lt.s32.totalorder %s834, 31
      %s836 = scalar_select %p835, %s834, 31
      %s837 = smul.addr %s836, 8
      %s838 = scalar_lea.vmem %s3, %s837
      // Predicated region
      $region41: #{gnn_forward.3} parent=31 // pred_check
        %p839 = pneg %p114
      $region42: #{gnn_forward.3} parent=31 // pred_check_branch
        %841 = sbr.rel (%p839) target = $region44
      $region43: #{gnn_forward.3} parent=31 // pred_region
        %s842 = smul.u32 16, %s18
      $region44: #{gnn_forward.3} parent=31 // pred_fallthru
        _
    $region32: #{gnn_forward.3} parent=5 // pred_fallthru
      _
    %p843 = scmp.le.s32.totalorder 2, %s9
    // Predicated region
    $region45: #{gnn_forward.3} parent=5 // pred_check
      %p844 = pneg %p843
    $region46: #{gnn_forward.3} parent=5 // pred_check_branch
      %846 = sbr.rel (%p844) target = $region48
    $region47: #{gnn_forward.3} parent=5 // pred_region
      %s847 = ssub.s32 %s9, 2
      // Predicated region
      $region49: #{gnn_forward.3} parent=47 // pred_check
        %p848 = pneg %p120
      $region50: #{gnn_forward.3} parent=47 // pred_check_branch
        %850 = sbr.rel (%p848) target = $region52
      $region51: #{gnn_forward.3} parent=47 // pred_region
        %s851 = smul.u32 16, %s20
        %p852 = scmp.lt.s32.totalorder %s851, 31
        %s853 = scalar_select %p852, %s851, 31
        %s854 = smul.addr %s853, 8
        %s855 = scalar_lea.vmem %s3, %s854
      $region52: #{gnn_forward.3} parent=47 // pred_fallthru
        _
    $region48: #{gnn_forward.3} parent=5 // pred_fallthru
      _
  $region6: #{gnn_forward.3} parent=0 // loop_footer
    %s13 = sadd.s32 1, %s9
  $region7: #{gnn_forward.3} parent=0 // loop_footer_branch
    %8 = sbr.rel target = $region3
  $region8: #{gnn_forward.3} parent=0 // loop_exit
    _

</llo_original>
